<compile_context>
chip_gen: v5e
topology: v5e:2x2
jax: 0.10.0
libtpu: 0.0.40
codegen_flags: <defaults>
</compile_context>

<pallas_src>
import functools
import numpy as np
import jax
import jax.numpy as jnp
from jax.experimental import pallas as pl
from jax.experimental.pallas import tpu as pltpu


def _round_up(v, m):
    return ((v + m - 1) // m) * m


def _elu(v):
    # PyTorch nn.ELU(alpha=1): v if v > 0 else exp(v) - 1
    return jnp.where(v > 0, v, jnp.exp(v) - 1.0)


def _mann_kernel(x_ref,
                 wg0_ref, bg0_ref, wg1_ref, bg1_ref, wg2_ref, bg2_ref,
                 w0_ref, b0_ref, w1_ref, b1_ref, w2_ref, b2_ref,
                 out_ref, *, approx_recip):
    f32 = jnp.float32
    bf16 = jnp.bfloat16

    x = x_ref[...]                                                   # (TB, I) f32
    tb = x.shape[0]

    # ---------------- gating network: tiny MLP + softmax over experts --------
    # The gather x[:, index_gating] was folded into wg0 (zero rows for
    # unselected features), so x feeds the gating net directly.
    h = _elu(jnp.dot(x, wg0_ref[...], preferred_element_type=f32) + bg0_ref[...])
    h = _elu(jnp.dot(h, wg1_ref[...], preferred_element_type=f32) + bg1_ref[...])
    logits = jnp.dot(h, wg2_ref[...], preferred_element_type=f32) + bg2_ref[...]
    m = jnp.max(logits, axis=-1, keepdims=True)
    p = jnp.exp(logits - m)
    denom = jnp.sum(p, axis=-1, keepdims=True)
    if approx_recip:
        # EUP approximate reciprocal: blend coefficients sum to 1 only to
        # ~2^-12 relative error (documented deviation from exact softmax).
        bc = p * pl.reciprocal(denom, approx=True)                   # (TB, E)
    else:
        bc = p / denom

    num_experts = wg2_ref.shape[1]

    # Per-expert blend coefficients broadcast ONCE per distinct layer width and
    # reused across layers (JAX does not CSE broadcast_in_dim).
    bcast_cache = {}

    def bc_cols(d):
        if d not in bcast_cache:
            bcast_cache[d] = [jnp.broadcast_to(bc[:, e:e + 1], (tb, d))
                              for e in range(num_experts)]
        return bcast_cache[d]

    # ---------------- expert-blended linear layers ----------------------------
    # Weights packed as (K, E*D) bf16 -> one wide MXU matmul per layer.  The
    # blend is E static lane-aligned slices scaled by the (hoisted) coefficient
    # broadcasts.  The blended bias is a tiny exact (TB,E)x(E,D) matmul.
    def blended(h_in_bf16, w_ref, b_ref):
        d = b_ref.shape[1]
        acc_all = jnp.dot(h_in_bf16, w_ref[...],
                          preferred_element_type=f32)                # (TB, E*D)
        cols = bc_cols(d)
        acc = cols[0] * acc_all[:, 0:d]
        for e in range(1, num_experts):                              # static unroll
            acc = acc + cols[e] * acc_all[:, e * d:(e + 1) * d]
        return acc + jnp.dot(bc, b_ref[...], preferred_element_type=f32)

    x_bf = x.astype(bf16)
    h1 = _elu(blended(x_bf, w0_ref, b0_ref))                         # (TB, Hp)
    h2 = _elu(blended(h1.astype(bf16), w1_ref, b1_ref))              # (TB, Hp)
    out_ref[...] = blended(h2.astype(bf16), w2_ref, b2_ref)          # (TB, Op)


def _fuse_experts(a_t, b, k_pad, d_pad):
    """Pack (E, K, D) expert weights into one (Kp, E*Dp) bf16 matrix and (E, D)
    biases into an (E, Dp) f32 matrix (pure layout plumbing, done once)."""
    E, K, D = a_t.shape
    a = jnp.pad(a_t, ((0, 0), (0, k_pad - K), (0, d_pad - D)))
    w = jnp.transpose(a, (1, 0, 2)).reshape(k_pad, E * d_pad).astype(jnp.bfloat16)
    bias = jnp.pad(b, ((0, 0), (0, d_pad - D))).astype(jnp.float32)   # (E, Dp)
    return w, bias


def prepare_mann_weights(params, index_gating):
    """One-time parameter repack, hoisted out of the per-call forward path.
    The gating feature gather is folded into a scattered gating weight so the
    kernel consumes the raw x directly."""
    E, I, H = params["a0_t"].shape
    O = params["a2_t"].shape[2]
    Hg = params["wg0_t"].shape[1]
    Hp = _round_up(H, 128)     # padded hidden (lane-aligned expert slices)
    Op = _round_up(O, 128)     # padded output (lane-dense stores)

    idx = jnp.asarray(index_gating, dtype=jnp.int32)
    # x[:, idx] @ wg0  ==  x @ scatter_rows(wg0) : zero rows for unselected feats.
    wg0_full = jnp.zeros((I, Hg), jnp.float32).at[idx].set(
        params["wg0_t"].astype(jnp.float32))

    w0, b0 = _fuse_experts(params["a0_t"], params["b0"], I, Hp)
    w1, b1 = _fuse_experts(params["a1_t"], params["b1"], Hp, Hp)
    w2, b2 = _fuse_experts(params["a2_t"], params["b2"], Hp, Op)

    return dict(
        wg0=wg0_full, bg0=params["bg0"].astype(jnp.float32),
        wg1=params["wg1_t"].astype(jnp.float32), bg1=params["bg1"].astype(jnp.float32),
        wg2=params["wg2_t"].astype(jnp.float32), bg2=params["bg2"].astype(jnp.float32),
        w0=w0, b0=b0, w1=w1, b1=b1, w2=w2, b2=b2,
        dims=dict(E=E, I=I, H=H, O=O, Hg=Hg, Hp=Hp, Op=Op),
    )


def mann_forward(x, fused, *, tile_b=None,
                 vmem_limit_bytes=48 * 1024 * 1024,
                 approx_softmax_recip=True):
    """Run the MANN forward pass with pre-fused weights (see prepare_mann_weights).

    tile_b:   batch tile; default caps at 256 (safe per-TensorCore VMEM on v7x).
              On 128 MiB parts (v5e/v6e) 512 is fine for large B.
    """
    dims = fused["dims"]
    E, I, O = dims["E"], dims["I"], dims["O"]
    Hg, Hp, Op = dims["Hg"], dims["Hp"], dims["Op"]

    B = x.shape[0]
    assert x.shape[1] == I, "input feature size mismatch"

    if tile_b is None:
        tile_b = 256 if B > 256 else _round_up(B, 8)
    else:
        tile_b = max(8, _round_up(min(tile_b, _round_up(B, 8)), 8))
    Bp = _round_up(B, tile_b)          # pad batch: no divisibility requirement
    grid = (Bp // tile_b,)

    xp = x.astype(jnp.float32)
    if Bp != B:
        xp = jnp.pad(xp, ((0, Bp - B), (0, 0)))

    # Grid-invariant weights/biases: single-buffered (fetched exactly once;
    # a second pipeline buffer would be pure VMEM waste).
    def const(rows, cols):
        return pl.BlockSpec((rows, cols), lambda i: (0, 0),
                            pipeline_mode=pl.Buffered(1))

    # Batch axis shards across TensorCores when grid > 1.
    dim_sem = ("parallel",) if grid[0] > 1 else ("arbitrary",)

    kernel = functools.partial(_mann_kernel, approx_recip=approx_softmax_recip)

    out = pl.pallas_call(
        kernel,
        out_shape=jax.ShapeDtypeStruct((Bp, Op), jnp.float32),
        grid_spec=pltpu.PrefetchScalarGridSpec(
            num_scalar_prefetch=0,
            grid=grid,
            in_specs=[
                pl.BlockSpec((tile_b, I), lambda i: (i, 0)),   # x block (f32)
                const(I, Hg), const(1, Hg),                    # gating layer 0 (W^T, b)
                const(Hg, Hg), const(1, Hg),                   # gating layer 1
                const(Hg, E), const(1, E),                     # gating layer 2
                const(I, E * Hp), const(E, Hp),                # expert layer 0 fused
                const(Hp, E * Hp), const(E, Hp),               # expert layer 1 fused
                const(Hp, E * Op), const(E, Op),               # expert layer 2 fused
            ],
            out_specs=pl.BlockSpec((tile_b, Op), lambda i: (i, 0)),
        ),
        compiler_params=pltpu.CompilerParams(
            dimension_semantics=dim_sem,
            vmem_limit_bytes=vmem_limit_bytes),
    )(xp,
      fused["wg0"], fused["bg0"], fused["wg1"], fused["bg1"],
      fused["wg2"], fused["bg2"],
      fused["w0"], fused["b0"], fused["w1"], fused["b1"],
      fused["w2"], fused["b2"])
    return out[:B, :O]


def init_params(key, *, num_experts, input_size, output_size, hidden_size,
                gating_hidden_size, gating_input_size):
    """Deterministic synthetic parameters (shapes match the PyTorch module)."""
    E, I, H, O = num_experts, input_size, hidden_size, output_size
    G, Hg = gating_input_size, gating_hidden_size
    ks = jax.random.split(key, 9)

    def unif(k, shape, fan):
        bound = float(np.sqrt(6.0 / fan))
        return jax.random.uniform(k, shape, jnp.float32, -bound, bound)

    return dict(
        # Gating network weights stored transposed: (in, out); biases as row vectors.
        wg0_t=unif(ks[0], (G, Hg), G + Hg),
        bg0=unif(ks[1], (1, Hg), Hg) * 0.1,
        wg1_t=unif(ks[2], (Hg, Hg), 2 * Hg),
        bg1=unif(ks[3], (1, Hg), Hg) * 0.1,
        wg2_t=unif(ks[4], (Hg, E), Hg + E),
        bg2=jnp.zeros((1, E), jnp.float32),
        # Expert weights (alpha) stored transposed: (E, in, out); biases (beta): (E, out).
        a0_t=unif(ks[5], (E, I, H), I + H),
        b0=unif(ks[6], (E, H), H) * 0.1,
        a1_t=unif(ks[7], (E, H, H), 2 * H),
        b1=jnp.zeros((E, H), jnp.float32),
        a2_t=unif(ks[8], (E, H, O), H + O),
        b2=jnp.zeros((E, O), jnp.float32),
    )


def mann_reference(x, params, index_gating):
    """Plain-JAX reference reproducing the PyTorch forward (blend-then-matmul)."""
    P = jax.lax.Precision.HIGHEST
    dot = lambda a, b: jnp.dot(a, b, precision=P)
    gx = x[:, jnp.asarray(index_gating)]
    h = _elu(dot(gx, params["wg0_t"]) + params["bg0"])
    h = _elu(dot(h, params["wg1_t"]) + params["bg1"])
    logits = dot(h, params["wg2_t"]) + params["bg2"]
    bc = jax.nn.softmax(logits, axis=-1)                              # (B, E)

    def layer(hin, a_t, b):
        w = jnp.einsum("be,eio->bio", bc, a_t, precision=P)           # blended W^T per batch
        bias = dot(bc, b)                                             # blended bias
        return jnp.einsum("bi,bio->bo", hin, w, precision=P) + bias

    h1 = _elu(layer(x, params["a0_t"], params["b0"]))
    h2 = _elu(layer(h1, params["a1_t"], params["b1"]))
    return layer(h2, params["a2_t"], params["b2"])


if __name__ == "__main__":
    # Small shapes consistent with the MANN module (defaults: 8 experts,
    # 480 -> 512 -> 512 -> 363 main net, 19-feature / 32-hidden gating net).
    B = 16          # batch
    E = 8           # num_experts
    I = 160         # input_size
    H = 128         # hidden_size
    O = 96          # output_size
    Hg = 32         # gating hidden size
    index_gating = [5, 6, 7, 21, 22, 23, 45, 46, 47, 61, 62, 63,
                    84, 85, 86, 87, 88, 89, 90]   # 19 gating features (< input_size)

    key = jax.random.PRNGKey(0)
    kx, kp = jax.random.split(key)
    x = jax.random.normal(kx, (B, I), dtype=jnp.float32)
    params = init_params(kp, num_experts=E, input_size=I, output_size=O,
                         hidden_size=H, gating_hidden_size=Hg,
                         gating_input_size=len(index_gating))

    # One-time weight fusion (hoisted out of the per-call forward path).
    fused = jax.tree_util.tree_map(jax.block_until_ready,
                                   prepare_mann_weights(params, index_gating))

    out = mann_forward(x, fused)
    out = jax.block_until_ready(out)
    assert out.shape == (B, O)

    ref = mann_reference(x, params, index_gating)
    # Tolerance accounts for bf16 matmul inputs (f32 accumulation) and the
    # approximate softmax reciprocal in the kernel vs. the f32-HIGHEST reference.
    np.testing.assert_allclose(np.asarray(out), np.asarray(ref), rtol=3e-2, atol=3e-2)

    print("KERNEL_OK")
</pallas_src>

<mosaic_0001>
module attributes {stable_mosaic.version = 11 : i64} {
  func.func @_mann_kernel(%arg0: i32, %arg1: memref<16x160xf32, #tpu.memory_space<vmem>>, %arg2: memref<160x32xf32, #tpu.memory_space<vmem>>, %arg3: memref<1x32xf32, #tpu.memory_space<vmem>>, %arg4: memref<32x32xf32, #tpu.memory_space<vmem>>, %arg5: memref<1x32xf32, #tpu.memory_space<vmem>>, %arg6: memref<32x8xf32, #tpu.memory_space<vmem>>, %arg7: memref<1x8xf32, #tpu.memory_space<vmem>>, %arg8: memref<160x1024xbf16, #tpu.memory_space<vmem>>, %arg9: memref<8x128xf32, #tpu.memory_space<vmem>>, %arg10: memref<128x1024xbf16, #tpu.memory_space<vmem>>, %arg11: memref<8x128xf32, #tpu.memory_space<vmem>>, %arg12: memref<128x1024xbf16, #tpu.memory_space<vmem>>, %arg13: memref<8x128xf32, #tpu.memory_space<vmem>>, %arg14: memref<16x128xf32, #tpu.memory_space<vmem>>) attributes {dimension_semantics = [#tpu.dimension_semantics<arbitrary>], iteration_bounds = array<i64: 1>, scalar_prefetch = 0 : i64, scratch_operands = 0 : i64, tpu.core_type = #tpu.core_type<tc>, window_params = [{transform_indices = @transform_0, window_bounds = array<i64: 16, 160>}, {pipeline_mode = #tpu.pipeline_mode<synchronous>, transform_indices = @transform_1, window_bounds = array<i64: 160, 32>}, {pipeline_mode = #tpu.pipeline_mode<synchronous>, transform_indices = @transform_2, window_bounds = array<i64: 1, 32>}, {pipeline_mode = #tpu.pipeline_mode<synchronous>, transform_indices = @transform_3, window_bounds = array<i64: 32, 32>}, {pipeline_mode = #tpu.pipeline_mode<synchronous>, transform_indices = @transform_4, window_bounds = array<i64: 1, 32>}, {pipeline_mode = #tpu.pipeline_mode<synchronous>, transform_indices = @transform_5, window_bounds = array<i64: 32, 8>}, {pipeline_mode = #tpu.pipeline_mode<synchronous>, transform_indices = @transform_6, window_bounds = array<i64: 1, 8>}, {pipeline_mode = #tpu.pipeline_mode<synchronous>, transform_indices = @transform_7, window_bounds = array<i64: 160, 1024>}, {pipeline_mode = #tpu.pipeline_mode<synchronous>, transform_indices = @transform_8, window_bounds = array<i64: 8, 128>}, {pipeline_mode = #tpu.pipeline_mode<synchronous>, transform_indices = @transform_9, window_bounds = array<i64: 128, 1024>}, {pipeline_mode = #tpu.pipeline_mode<synchronous>, transform_indices = @transform_10, window_bounds = array<i64: 8, 128>}, {pipeline_mode = #tpu.pipeline_mode<synchronous>, transform_indices = @transform_11, window_bounds = array<i64: 128, 1024>}, {pipeline_mode = #tpu.pipeline_mode<synchronous>, transform_indices = @transform_12, window_bounds = array<i64: 8, 128>}, {transform_indices = @transform_13, window_bounds = array<i64: 16, 128>}]} {
    %c0 = arith.constant 0 : index
    %c0_0 = arith.constant 0 : index
    %0 = vector.load %arg1[%c0, %c0_0] : memref<16x160xf32, #tpu.memory_space<vmem>>, vector<16x160xf32>
    %c0_1 = arith.constant 0 : index
    %c0_2 = arith.constant 0 : index
    %1 = vector.load %arg2[%c0_1, %c0_2] : memref<160x32xf32, #tpu.memory_space<vmem>>, vector<160x32xf32>
    %cst = arith.constant dense<0.000000e+00> : vector<16x32xf32>
    %2 = tpu.matmul %0, %1, %cst {dimension_numbers = #tpu.dot_dimension_numbers<[1], [0], [0], [1], [0, 0, 1, 1], [], []>} : vector<16x160xf32>, vector<160x32xf32>, vector<16x32xf32> -> vector<16x32xf32>
    %c0_3 = arith.constant 0 : index
    %c0_4 = arith.constant 0 : index
    %3 = vector.load %arg3[%c0_3, %c0_4] : memref<1x32xf32, #tpu.memory_space<vmem>>, vector<1x32xf32>
    %4 = vector.broadcast %3 : vector<1x32xf32> to vector<16x32xf32>
    %5 = arith.addf %2, %4 : vector<16x32xf32>
    %cst_5 = arith.constant 0.000000e+00 : f32
    %6 = vector.broadcast %cst_5 : f32 to vector<16x32xf32>
    %7 = arith.cmpf ogt, %5, %6 : vector<16x32xf32>
    %8 = math.exp %5 : vector<16x32xf32>
    %cst_6 = arith.constant 1.000000e+00 : f32
    %9 = vector.broadcast %cst_6 : f32 to vector<16x32xf32>
    %10 = arith.subf %8, %9 : vector<16x32xf32>
    %11 = arith.select %7, %5, %10 : vector<16x32xi1>, vector<16x32xf32>
    %c0_7 = arith.constant 0 : index
    %c0_8 = arith.constant 0 : index
    %12 = vector.load %arg4[%c0_7, %c0_8] : memref<32x32xf32, #tpu.memory_space<vmem>>, vector<32x32xf32>
    %cst_9 = arith.constant dense<0.000000e+00> : vector<16x32xf32>
    %13 = tpu.matmul %11, %12, %cst_9 {dimension_numbers = #tpu.dot_dimension_numbers<[1], [0], [0], [1], [0, 0, 1, 1], [], []>} : vector<16x32xf32>, vector<32x32xf32>, vector<16x32xf32> -> vector<16x32xf32>
    %c0_10 = arith.constant 0 : index
    %c0_11 = arith.constant 0 : index
    %14 = vector.load %arg5[%c0_10, %c0_11] : memref<1x32xf32, #tpu.memory_space<vmem>>, vector<1x32xf32>
    %15 = vector.broadcast %14 : vector<1x32xf32> to vector<16x32xf32>
    %16 = arith.addf %13, %15 : vector<16x32xf32>
    %cst_12 = arith.constant 0.000000e+00 : f32
    %17 = vector.broadcast %cst_12 : f32 to vector<16x32xf32>
    %18 = arith.cmpf ogt, %16, %17 : vector<16x32xf32>
    %19 = math.exp %16 : vector<16x32xf32>
    %cst_13 = arith.constant 1.000000e+00 : f32
    %20 = vector.broadcast %cst_13 : f32 to vector<16x32xf32>
    %21 = arith.subf %19, %20 : vector<16x32xf32>
    %22 = arith.select %18, %16, %21 : vector<16x32xi1>, vector<16x32xf32>
    %c0_14 = arith.constant 0 : index
    %c0_15 = arith.constant 0 : index
    %23 = vector.load %arg6[%c0_14, %c0_15] : memref<32x8xf32, #tpu.memory_space<vmem>>, vector<32x8xf32>
    %cst_16 = arith.constant dense<0.000000e+00> : vector<16x8xf32>
    %24 = tpu.matmul %22, %23, %cst_16 {dimension_numbers = #tpu.dot_dimension_numbers<[1], [0], [0], [1], [0, 0, 1, 1], [], []>} : vector<16x32xf32>, vector<32x8xf32>, vector<16x8xf32> -> vector<16x8xf32>
    %c0_17 = arith.constant 0 : index
    %c0_18 = arith.constant 0 : index
    %25 = vector.load %arg7[%c0_17, %c0_18] : memref<1x8xf32, #tpu.memory_space<vmem>>, vector<1x8xf32>
    %26 = vector.broadcast %25 : vector<1x8xf32> to vector<16x8xf32>
    %27 = arith.addf %24, %26 : vector<16x8xf32>
    %cst_19 = arith.constant dense<0xFF800000> : vector<16xf32>
    %28 = vector.multi_reduction <maximumf>, %27, %cst_19 [1] : vector<16x8xf32> to vector<16xf32>
    %29 = vector.shape_cast %28 : vector<16xf32> to vector<16x1xf32>
    %30 = vector.broadcast %29 : vector<16x1xf32> to vector<16x8xf32>
    %31 = arith.subf %27, %30 : vector<16x8xf32>
    %32 = math.exp %31 : vector<16x8xf32>
    %cst_20 = arith.constant dense<0.000000e+00> : vector<16xf32>
    %33 = vector.multi_reduction <add>, %32, %cst_20 [1] : vector<16x8xf32> to vector<16xf32>
    %34 = vector.shape_cast %33 : vector<16xf32> to vector<16x1xf32>
    %35 = tpu.reciprocal %34 {approx = true} : vector<16x1xf32> -> vector<16x1xf32>
    %36 = vector.broadcast %35 : vector<16x1xf32> to vector<16x8xf32>
    %37 = arith.mulf %32, %36 : vector<16x8xf32>
    %38 = arith.truncf %0 : vector<16x160xf32> to vector<16x160xbf16>
    %c0_21 = arith.constant 0 : index
    %c0_22 = arith.constant 0 : index
    %39 = vector.load %arg8[%c0_21, %c0_22] : memref<160x1024xbf16, #tpu.memory_space<vmem>>, vector<160x1024xbf16>
    %cst_23 = arith.constant dense<0.000000e+00> : vector<16x1024xf32>
    %40 = tpu.matmul %38, %39, %cst_23 {dimension_numbers = #tpu.dot_dimension_numbers<[1], [0], [0], [1], [0, 0, 1, 1], [], []>} : vector<16x160xbf16>, vector<160x1024xbf16>, vector<16x1024xf32> -> vector<16x1024xf32>
    %41 = vector.extract_strided_slice %37 {offsets = [0, 0], sizes = [16, 1], strides = [1, 1]} : vector<16x8xf32> to vector<16x1xf32>
    %42 = vector.shape_cast %41 : vector<16x1xf32> to vector<16x1xf32>
    %43 = vector.broadcast %42 : vector<16x1xf32> to vector<16x128xf32>
    %44 = vector.extract_strided_slice %37 {offsets = [0, 1], sizes = [16, 1], strides = [1, 1]} : vector<16x8xf32> to vector<16x1xf32>
    %45 = vector.shape_cast %44 : vector<16x1xf32> to vector<16x1xf32>
    %46 = vector.broadcast %45 : vector<16x1xf32> to vector<16x128xf32>
    %47 = vector.extract_strided_slice %37 {offsets = [0, 2], sizes = [16, 1], strides = [1, 1]} : vector<16x8xf32> to vector<16x1xf32>
    %48 = vector.shape_cast %47 : vector<16x1xf32> to vector<16x1xf32>
    %49 = vector.broadcast %48 : vector<16x1xf32> to vector<16x128xf32>
    %50 = vector.extract_strided_slice %37 {offsets = [0, 3], sizes = [16, 1], strides = [1, 1]} : vector<16x8xf32> to vector<16x1xf32>
    %51 = vector.shape_cast %50 : vector<16x1xf32> to vector<16x1xf32>
    %52 = vector.broadcast %51 : vector<16x1xf32> to vector<16x128xf32>
    %53 = vector.extract_strided_slice %37 {offsets = [0, 4], sizes = [16, 1], strides = [1, 1]} : vector<16x8xf32> to vector<16x1xf32>
    %54 = vector.shape_cast %53 : vector<16x1xf32> to vector<16x1xf32>
    %55 = vector.broadcast %54 : vector<16x1xf32> to vector<16x128xf32>
    %56 = vector.extract_strided_slice %37 {offsets = [0, 5], sizes = [16, 1], strides = [1, 1]} : vector<16x8xf32> to vector<16x1xf32>
    %57 = vector.shape_cast %56 : vector<16x1xf32> to vector<16x1xf32>
    %58 = vector.broadcast %57 : vector<16x1xf32> to vector<16x128xf32>
    %59 = vector.extract_strided_slice %37 {offsets = [0, 6], sizes = [16, 1], strides = [1, 1]} : vector<16x8xf32> to vector<16x1xf32>
    %60 = vector.shape_cast %59 : vector<16x1xf32> to vector<16x1xf32>
    %61 = vector.broadcast %60 : vector<16x1xf32> to vector<16x128xf32>
    %62 = vector.extract_strided_slice %37 {offsets = [0, 7], sizes = [16, 1], strides = [1, 1]} : vector<16x8xf32> to vector<16x1xf32>
    %63 = vector.shape_cast %62 : vector<16x1xf32> to vector<16x1xf32>
    %64 = vector.broadcast %63 : vector<16x1xf32> to vector<16x128xf32>
    %65 = vector.extract_strided_slice %40 {offsets = [0, 0], sizes = [16, 128], strides = [1, 1]} : vector<16x1024xf32> to vector<16x128xf32>
    %66 = arith.mulf %43, %65 : vector<16x128xf32>
    %67 = vector.extract_strided_slice %40 {offsets = [0, 128], sizes = [16, 128], strides = [1, 1]} : vector<16x1024xf32> to vector<16x128xf32>
    %68 = arith.mulf %46, %67 : vector<16x128xf32>
    %69 = arith.addf %66, %68 : vector<16x128xf32>
    %70 = vector.extract_strided_slice %40 {offsets = [0, 256], sizes = [16, 128], strides = [1, 1]} : vector<16x1024xf32> to vector<16x128xf32>
    %71 = arith.mulf %49, %70 : vector<16x128xf32>
    %72 = arith.addf %69, %71 : vector<16x128xf32>
    %73 = vector.extract_strided_slice %40 {offsets = [0, 384], sizes = [16, 128], strides = [1, 1]} : vector<16x1024xf32> to vector<16x128xf32>
    %74 = arith.mulf %52, %73 : vector<16x128xf32>
    %75 = arith.addf %72, %74 : vector<16x128xf32>
    %76 = vector.extract_strided_slice %40 {offsets = [0, 512], sizes = [16, 128], strides = [1, 1]} : vector<16x1024xf32> to vector<16x128xf32>
    %77 = arith.mulf %55, %76 : vector<16x128xf32>
    %78 = arith.addf %75, %77 : vector<16x128xf32>
    %79 = vector.extract_strided_slice %40 {offsets = [0, 640], sizes = [16, 128], strides = [1, 1]} : vector<16x1024xf32> to vector<16x128xf32>
    %80 = arith.mulf %58, %79 : vector<16x128xf32>
    %81 = arith.addf %78, %80 : vector<16x128xf32>
    %82 = vector.extract_strided_slice %40 {offsets = [0, 768], sizes = [16, 128], strides = [1, 1]} : vector<16x1024xf32> to vector<16x128xf32>
    %83 = arith.mulf %61, %82 : vector<16x128xf32>
    %84 = arith.addf %81, %83 : vector<16x128xf32>
    %85 = vector.extract_strided_slice %40 {offsets = [0, 896], sizes = [16, 128], strides = [1, 1]} : vector<16x1024xf32> to vector<16x128xf32>
    %86 = arith.mulf %64, %85 : vector<16x128xf32>
    %87 = arith.addf %84, %86 : vector<16x128xf32>
    %c0_24 = arith.constant 0 : index
    %c0_25 = arith.constant 0 : index
    %88 = vector.load %arg9[%c0_24, %c0_25] : memref<8x128xf32, #tpu.memory_space<vmem>>, vector<8x128xf32>
    %cst_26 = arith.constant dense<0.000000e+00> : vector<16x128xf32>
    %89 = tpu.matmul %37, %88, %cst_26 {dimension_numbers = #tpu.dot_dimension_numbers<[1], [0], [0], [1], [0, 0, 1, 1], [], []>} : vector<16x8xf32>, vector<8x128xf32>, vector<16x128xf32> -> vector<16x128xf32>
    %90 = arith.addf %87, %89 : vector<16x128xf32>
    %cst_27 = arith.constant 0.000000e+00 : f32
    %91 = vector.broadcast %cst_27 : f32 to vector<16x128xf32>
    %92 = arith.cmpf ogt, %90, %91 : vector<16x128xf32>
    %93 = math.exp %90 : vector<16x128xf32>
    %cst_28 = arith.constant 1.000000e+00 : f32
    %94 = vector.broadcast %cst_28 : f32 to vector<16x128xf32>
    %95 = arith.subf %93, %94 : vector<16x128xf32>
    %96 = arith.select %92, %90, %95 : vector<16x128xi1>, vector<16x128xf32>
    %97 = arith.truncf %96 : vector<16x128xf32> to vector<16x128xbf16>
    %c0_29 = arith.constant 0 : index
    %c0_30 = arith.constant 0 : index
    %98 = vector.load %arg10[%c0_29, %c0_30] : memref<128x1024xbf16, #tpu.memory_space<vmem>>, vector<128x1024xbf16>
    %cst_31 = arith.constant dense<0.000000e+00> : vector<16x1024xf32>
    %99 = tpu.matmul %97, %98, %cst_31 {dimension_numbers = #tpu.dot_dimension_numbers<[1], [0], [0], [1], [0, 0, 1, 1], [], []>} : vector<16x128xbf16>, vector<128x1024xbf16>, vector<16x1024xf32> -> vector<16x1024xf32>
    %100 = vector.extract_strided_slice %99 {offsets = [0, 0], sizes = [16, 128], strides = [1, 1]} : vector<16x1024xf32> to vector<16x128xf32>
    %101 = arith.mulf %43, %100 : vector<16x128xf32>
    %102 = vector.extract_strided_slice %99 {offsets = [0, 128], sizes = [16, 128], strides = [1, 1]} : vector<16x1024xf32> to vector<16x128xf32>
    %103 = arith.mulf %46, %102 : vector<16x128xf32>
    %104 = arith.addf %101, %103 : vector<16x128xf32>
    %105 = vector.extract_strided_slice %99 {offsets = [0, 256], sizes = [16, 128], strides = [1, 1]} : vector<16x1024xf32> to vector<16x128xf32>
    %106 = arith.mulf %49, %105 : vector<16x128xf32>
    %107 = arith.addf %104, %106 : vector<16x128xf32>
    %108 = vector.extract_strided_slice %99 {offsets = [0, 384], sizes = [16, 128], strides = [1, 1]} : vector<16x1024xf32> to vector<16x128xf32>
    %109 = arith.mulf %52, %108 : vector<16x128xf32>
    %110 = arith.addf %107, %109 : vector<16x128xf32>
    %111 = vector.extract_strided_slice %99 {offsets = [0, 512], sizes = [16, 128], strides = [1, 1]} : vector<16x1024xf32> to vector<16x128xf32>
    %112 = arith.mulf %55, %111 : vector<16x128xf32>
    %113 = arith.addf %110, %112 : vector<16x128xf32>
    %114 = vector.extract_strided_slice %99 {offsets = [0, 640], sizes = [16, 128], strides = [1, 1]} : vector<16x1024xf32> to vector<16x128xf32>
    %115 = arith.mulf %58, %114 : vector<16x128xf32>
    %116 = arith.addf %113, %115 : vector<16x128xf32>
    %117 = vector.extract_strided_slice %99 {offsets = [0, 768], sizes = [16, 128], strides = [1, 1]} : vector<16x1024xf32> to vector<16x128xf32>
    %118 = arith.mulf %61, %117 : vector<16x128xf32>
    %119 = arith.addf %116, %118 : vector<16x128xf32>
    %120 = vector.extract_strided_slice %99 {offsets = [0, 896], sizes = [16, 128], strides = [1, 1]} : vector<16x1024xf32> to vector<16x128xf32>
    %121 = arith.mulf %64, %120 : vector<16x128xf32>
    %122 = arith.addf %119, %121 : vector<16x128xf32>
    %c0_32 = arith.constant 0 : index
    %c0_33 = arith.constant 0 : index
    %123 = vector.load %arg11[%c0_32, %c0_33] : memref<8x128xf32, #tpu.memory_space<vmem>>, vector<8x128xf32>
    %cst_34 = arith.constant dense<0.000000e+00> : vector<16x128xf32>
    %124 = tpu.matmul %37, %123, %cst_34 {dimension_numbers = #tpu.dot_dimension_numbers<[1], [0], [0], [1], [0, 0, 1, 1], [], []>} : vector<16x8xf32>, vector<8x128xf32>, vector<16x128xf32> -> vector<16x128xf32>
    %125 = arith.addf %122, %124 : vector<16x128xf32>
    %cst_35 = arith.constant 0.000000e+00 : f32
    %126 = vector.broadcast %cst_35 : f32 to vector<16x128xf32>
    %127 = arith.cmpf ogt, %125, %126 : vector<16x128xf32>
    %128 = math.exp %125 : vector<16x128xf32>
    %cst_36 = arith.constant 1.000000e+00 : f32
    %129 = vector.broadcast %cst_36 : f32 to vector<16x128xf32>
    %130 = arith.subf %128, %129 : vector<16x128xf32>
    %131 = arith.select %127, %125, %130 : vector<16x128xi1>, vector<16x128xf32>
    %132 = arith.truncf %131 : vector<16x128xf32> to vector<16x128xbf16>
    %c0_37 = arith.constant 0 : index
    %c0_38 = arith.constant 0 : index
    %133 = vector.load %arg12[%c0_37, %c0_38] : memref<128x1024xbf16, #tpu.memory_space<vmem>>, vector<128x1024xbf16>
    %cst_39 = arith.constant dense<0.000000e+00> : vector<16x1024xf32>
    %134 = tpu.matmul %132, %133, %cst_39 {dimension_numbers = #tpu.dot_dimension_numbers<[1], [0], [0], [1], [0, 0, 1, 1], [], []>} : vector<16x128xbf16>, vector<128x1024xbf16>, vector<16x1024xf32> -> vector<16x1024xf32>
    %135 = vector.extract_strided_slice %134 {offsets = [0, 0], sizes = [16, 128], strides = [1, 1]} : vector<16x1024xf32> to vector<16x128xf32>
    %136 = arith.mulf %43, %135 : vector<16x128xf32>
    %137 = vector.extract_strided_slice %134 {offsets = [0, 128], sizes = [16, 128], strides = [1, 1]} : vector<16x1024xf32> to vector<16x128xf32>
    %138 = arith.mulf %46, %137 : vector<16x128xf32>
    %139 = arith.addf %136, %138 : vector<16x128xf32>
    %140 = vector.extract_strided_slice %134 {offsets = [0, 256], sizes = [16, 128], strides = [1, 1]} : vector<16x1024xf32> to vector<16x128xf32>
    %141 = arith.mulf %49, %140 : vector<16x128xf32>
    %142 = arith.addf %139, %141 : vector<16x128xf32>
    %143 = vector.extract_strided_slice %134 {offsets = [0, 384], sizes = [16, 128], strides = [1, 1]} : vector<16x1024xf32> to vector<16x128xf32>
    %144 = arith.mulf %52, %143 : vector<16x128xf32>
    %145 = arith.addf %142, %144 : vector<16x128xf32>
    %146 = vector.extract_strided_slice %134 {offsets = [0, 512], sizes = [16, 128], strides = [1, 1]} : vector<16x1024xf32> to vector<16x128xf32>
    %147 = arith.mulf %55, %146 : vector<16x128xf32>
    %148 = arith.addf %145, %147 : vector<16x128xf32>
    %149 = vector.extract_strided_slice %134 {offsets = [0, 640], sizes = [16, 128], strides = [1, 1]} : vector<16x1024xf32> to vector<16x128xf32>
    %150 = arith.mulf %58, %149 : vector<16x128xf32>
    %151 = arith.addf %148, %150 : vector<16x128xf32>
    %152 = vector.extract_strided_slice %134 {offsets = [0, 768], sizes = [16, 128], strides = [1, 1]} : vector<16x1024xf32> to vector<16x128xf32>
    %153 = arith.mulf %61, %152 : vector<16x128xf32>
    %154 = arith.addf %151, %153 : vector<16x128xf32>
    %155 = vector.extract_strided_slice %134 {offsets = [0, 896], sizes = [16, 128], strides = [1, 1]} : vector<16x1024xf32> to vector<16x128xf32>
    %156 = arith.mulf %64, %155 : vector<16x128xf32>
    %157 = arith.addf %154, %156 : vector<16x128xf32>
    %c0_40 = arith.constant 0 : index
    %c0_41 = arith.constant 0 : index
    %158 = vector.load %arg13[%c0_40, %c0_41] : memref<8x128xf32, #tpu.memory_space<vmem>>, vector<8x128xf32>
    %cst_42 = arith.constant dense<0.000000e+00> : vector<16x128xf32>
    %159 = tpu.matmul %37, %158, %cst_42 {dimension_numbers = #tpu.dot_dimension_numbers<[1], [0], [0], [1], [0, 0, 1, 1], [], []>} : vector<16x8xf32>, vector<8x128xf32>, vector<16x128xf32> -> vector<16x128xf32>
    %160 = arith.addf %157, %159 : vector<16x128xf32>
    %c0_43 = arith.constant 0 : index
    %c0_44 = arith.constant 0 : index
    %161 = vector.load %arg14[%c0_43, %c0_44] : memref<16x128xf32, #tpu.memory_space<vmem>>, vector<16x128xf32>
    tpu.vector_store %arg14[%c0_43, %c0_44], %160 {strides = array<i32>} : memref<16x128xf32, #tpu.memory_space<vmem>>, vector<16x128xf32>,
    return
  }
  func.func @transform_0(%arg0: i32) -> (i32, i32) {
    %c0_i32 = arith.constant 0 : i32
    %c0_i32_0 = arith.constant 0 : i32
    return %arg0, %c0_i32 : i32, i32
  }
  func.func @transform_1(%arg0: i32) -> (i32, i32) {
    %c0_i32 = arith.constant 0 : i32
    %c0_i32_0 = arith.constant 0 : i32
    %c0_i32_1 = arith.constant 0 : i32
    return %c0_i32, %c0_i32_0 : i32, i32
  }
  func.func @transform_2(%arg0: i32) -> (i32, i32) {
    %c0_i32 = arith.constant 0 : i32
    %c0_i32_0 = arith.constant 0 : i32
    %c0_i32_1 = arith.constant 0 : i32
    return %c0_i32, %c0_i32_0 : i32, i32
  }
  func.func @transform_3(%arg0: i32) -> (i32, i32) {
    %c0_i32 = arith.constant 0 : i32
    %c0_i32_0 = arith.constant 0 : i32
    %c0_i32_1 = arith.constant 0 : i32
    return %c0_i32, %c0_i32_0 : i32, i32
  }
  func.func @transform_4(%arg0: i32) -> (i32, i32) {
    %c0_i32 = arith.constant 0 : i32
    %c0_i32_0 = arith.constant 0 : i32
    %c0_i32_1 = arith.constant 0 : i32
    return %c0_i32, %c0_i32_0 : i32, i32
  }
  func.func @transform_5(%arg0: i32) -> (i32, i32) {
    %c0_i32 = arith.constant 0 : i32
    %c0_i32_0 = arith.constant 0 : i32
    %c0_i32_1 = arith.constant 0 : i32
    return %c0_i32, %c0_i32_0 : i32, i32
  }
  func.func @transform_6(%arg0: i32) -> (i32, i32) {
    %c0_i32 = arith.constant 0 : i32
    %c0_i32_0 = arith.constant 0 : i32
    %c0_i32_1 = arith.constant 0 : i32
    return %c0_i32, %c0_i32_0 : i32, i32
  }
  func.func @transform_7(%arg0: i32) -> (i32, i32) {
    %c0_i32 = arith.constant 0 : i32
    %c0_i32_0 = arith.constant 0 : i32
    %c0_i32_1 = arith.constant 0 : i32
    return %c0_i32, %c0_i32_0 : i32, i32
  }
  func.func @transform_8(%arg0: i32) -> (i32, i32) {
    %c0_i32 = arith.constant 0 : i32
    %c0_i32_0 = arith.constant 0 : i32
    %c0_i32_1 = arith.constant 0 : i32
    return %c0_i32, %c0_i32_0 : i32, i32
  }
  func.func @transform_9(%arg0: i32) -> (i32, i32) {
    %c0_i32 = arith.constant 0 : i32
    %c0_i32_0 = arith.constant 0 : i32
    %c0_i32_1 = arith.constant 0 : i32
    return %c0_i32, %c0_i32_0 : i32, i32
  }
  func.func @transform_10(%arg0: i32) -> (i32, i32) {
    %c0_i32 = arith.constant 0 : i32
    %c0_i32_0 = arith.constant 0 : i32
    %c0_i32_1 = arith.constant 0 : i32
    return %c0_i32, %c0_i32_0 : i32, i32
  }
  func.func @transform_11(%arg0: i32) -> (i32, i32) {
    %c0_i32 = arith.constant 0 : i32
    %c0_i32_0 = arith.constant 0 : i32
    %c0_i32_1 = arith.constant 0 : i32
    return %c0_i32, %c0_i32_0 : i32, i32
  }
  func.func @transform_12(%arg0: i32) -> (i32, i32) {
    %c0_i32 = arith.constant 0 : i32
    %c0_i32_0 = arith.constant 0 : i32
    %c0_i32_1 = arith.constant 0 : i32
    return %c0_i32, %c0_i32_0 : i32, i32
  }
  func.func @transform_13(%arg0: i32) -> (i32, i32) {
    %c0_i32 = arith.constant 0 : i32
    %c0_i32_0 = arith.constant 0 : i32
    return %arg0, %c0_i32 : i32, i32
  }
}

</mosaic_0001>

<llo_original>
// kernel: tpu_custom_call.1
$region0: #{tpu_custom_call.1}
  #allocation0 [shape = 'u32[]', space=smem, size = 0x4, offset = 0x4, fixed_abs, tag = 'smem constant byte address 0x4 - core index']
  #allocation1 [shape = 'u32[72,128]{1,0:T(1,128)}', space=vmem, size = 0x9000, scoped, tag = 'internal scratch']
  %s0 = inlined_call_operand.vmem [shape: f32[16,160], index: 0, kind: input, shape index: {}]
  %s1 = inlined_call_operand.vmem [shape: f32[160,32], index: 1, kind: input, shape index: {}]
  %s2 = inlined_call_operand.vmem [shape: f32[1,32], index: 2, kind: input, shape index: {}]
  %s3 = inlined_call_operand.vmem [shape: f32[32,32], index: 3, kind: input, shape index: {}]
  %s4 = inlined_call_operand.vmem [shape: f32[1,32], index: 4, kind: input, shape index: {}]
  %s5 = inlined_call_operand.vmem [shape: f32[32,8], index: 5, kind: input, shape index: {}]
  %s6 = inlined_call_operand.vmem [shape: f32[1,8], index: 6, kind: input, shape index: {}]
  %s7 = inlined_call_operand.hbm [shape: bf16[160,1024], index: 7, kind: input, shape index: {}]
  %s8 = inlined_call_operand.vmem [shape: f32[8,128], index: 8, kind: input, shape index: {}]
  %s9 = inlined_call_operand.hbm [shape: bf16[128,1024], index: 9, kind: input, shape index: {}]
  %s10 = inlined_call_operand.vmem [shape: f32[8,128], index: 10, kind: input, shape index: {}]
  %s11 = inlined_call_operand.hbm [shape: bf16[128,1024], index: 11, kind: input, shape index: {}]
  %s12 = inlined_call_operand.vmem [shape: f32[8,128], index: 12, kind: input, shape index: {}]
  %s13 = inlined_call_operand.hbm [shape: f32[16,128], index: 13, kind: output, shape index: {}]
  %s14 = sld [smem:[#allocation0]]
  $region74: #{tpu_custom_call.1} parent=0
    _
  %s16 = ssub.s32 1, %s14
  %s17 = scalar_select 0, %s16, %s14
  $region1: #{tpu_custom_call.1} parent=0
    #allocation2 [shape = 'u8[327680]{0}', space=vmem, size = 0x50000, scoped, tag = 'input window, operand 7, single buffered']
    #allocation3 [shape = 's32[1]{0}', space=sflag, size = 0x4, scoped, tag = 'scoped memory for tpu_custom_call.1']
    #allocation4 [shape = 's32[1]{0}', space=sflag, size = 0x4, scoped, tag = 'scoped memory for tpu_custom_call.1']
    #allocation5 [shape = 'u8[262144]{0}', space=vmem, size = 0x40000, scoped, tag = 'input window, operand 9, single buffered']
    #allocation6 [shape = 's32[1]{0}', space=sflag, size = 0x4, scoped, tag = 'scoped memory for tpu_custom_call.1']
    #allocation7 [shape = 'u8[262144]{0}', space=vmem, size = 0x40000, scoped, tag = 'input window, operand 11, single buffered']
    #allocation8 [shape = 'u8[8192]{0}', space=vmem, size = 0x2000, scoped, tag = 'output window, operand 0, single buffered']
    %18 = vsyncpa [#allocation3], 0
    %19 = vsyncpa [#allocation6], 0
    %20 = vsyncpa [#allocation4], 0
    // Predicated region
    $region2: #{tpu_custom_call.1} parent=1 // pred_check
      _
    $region3: #{tpu_custom_call.1} parent=1 // pred_check_branch
      %22 = sbr.rel (0) target = $region5
    $region4: #{tpu_custom_call.1} parent=1 // pred_region
      _
    $region5: #{tpu_custom_call.1} parent=1 // pred_fallthru
      _
    // Predicated region
    $region6: #{tpu_custom_call.1} parent=1 // pred_check
      _
    $region7: #{tpu_custom_call.1} parent=1 // pred_check_branch
      %24 = sbr.rel (0) target = $region9
    $region8: #{tpu_custom_call.1} parent=1 // pred_region
      _
    $region9: #{tpu_custom_call.1} parent=1 // pred_fallthru
      _
    // Predicated region
    $region10: #{tpu_custom_call.1} parent=1 // pred_check
      _
    $region11: #{tpu_custom_call.1} parent=1 // pred_check_branch
      %26 = sbr.rel (0) target = $region13
    $region12: #{tpu_custom_call.1} parent=1 // pred_region
      _
    $region13: #{tpu_custom_call.1} parent=1 // pred_fallthru
      _
    // Predicated region
    $region14: #{tpu_custom_call.1} parent=1 // pred_check
      _
    $region15: #{tpu_custom_call.1} parent=1 // pred_check_branch
      %28 = sbr.rel (0) target = $region17
    $region16: #{tpu_custom_call.1} parent=1 // pred_region
      _
    $region17: #{tpu_custom_call.1} parent=1 // pred_fallthru
      _
    // Predicated region
    $region18: #{tpu_custom_call.1} parent=1 // pred_check
      _
    $region19: #{tpu_custom_call.1} parent=1 // pred_check_branch
      %30 = sbr.rel (0) target = $region21
    $region20: #{tpu_custom_call.1} parent=1 // pred_region
      _
    $region21: #{tpu_custom_call.1} parent=1 // pred_fallthru
      _
    // Predicated region
    $region22: #{tpu_custom_call.1} parent=1 // pred_check
      _
    $region23: #{tpu_custom_call.1} parent=1 // pred_check_branch
      %32 = sbr.rel (0) target = $region25
    $region24: #{tpu_custom_call.1} parent=1 // pred_region
      _
    $region25: #{tpu_custom_call.1} parent=1 // pred_fallthru
      _
    // Predicated region
    $region26: #{tpu_custom_call.1} parent=1 // pred_check
      _
    $region27: #{tpu_custom_call.1} parent=1 // pred_check_branch
      %34 = sbr.rel (0) target = $region29
    $region28: #{tpu_custom_call.1} parent=1 // pred_region
      _
    $region29: #{tpu_custom_call.1} parent=1 // pred_fallthru
      _
    // Predicated region
    $region30: #{tpu_custom_call.1} parent=1 // pred_check
      _
    $region31: #{tpu_custom_call.1} parent=1 // pred_check_branch
      %36 = sbr.rel (0) target = $region33
    $region32: #{tpu_custom_call.1} parent=1 // pred_region
      %38 = vsyncadd [#allocation3], 0
      %s39 = sshll.u32 %s7, 4
      %s40 = int_to_ptr.hbm [resolvable:$true] %s39
      %s41 = sshll.u32 [#allocation2], 4
      %s42 = int_to_ptr.vmem [resolvable:$true] %s41
      %47 = dma.hbm_to_vmem [thread:$0]  %s40, 10240, %s42, [#allocation3], 512, 512, 32
    $region33: #{tpu_custom_call.1} parent=1 // pred_fallthru
      _
    // Predicated region
    $region34: #{tpu_custom_call.1} parent=1 // pred_check
      _
    $region35: #{tpu_custom_call.1} parent=1 // pred_check_branch
      %49 = sbr.rel (0) target = $region37
    $region36: #{tpu_custom_call.1} parent=1 // pred_region
      _
    $region37: #{tpu_custom_call.1} parent=1 // pred_fallthru
      _
    // Predicated region
    $region38: #{tpu_custom_call.1} parent=1 // pred_check
      _
    $region39: #{tpu_custom_call.1} parent=1 // pred_check_branch
      %51 = sbr.rel (0) target = $region41
    $region40: #{tpu_custom_call.1} parent=1 // pred_region
      %53 = vsyncadd [#allocation6], 0
      %s54 = sshll.u32 %s9, 4
      %s55 = int_to_ptr.hbm [resolvable:$true] %s54
      %s56 = sshll.u32 [#allocation5], 4
      %s57 = int_to_ptr.vmem [resolvable:$true] %s56
      %62 = dma.hbm_to_vmem [thread:$0]  %s55, 8192, %s57, [#allocation6], 512, 512, 32
    $region41: #{tpu_custom_call.1} parent=1 // pred_fallthru
      _
    // Predicated region
    $region42: #{tpu_custom_call.1} parent=1 // pred_check
      _
    $region43: #{tpu_custom_call.1} parent=1 // pred_check_branch
      %64 = sbr.rel (0) target = $region45
    $region44: #{tpu_custom_call.1} parent=1 // pred_region
      _
    $region45: #{tpu_custom_call.1} parent=1 // pred_fallthru
      _
    // Predicated region
    $region46: #{tpu_custom_call.1} parent=1 // pred_check
      _
    $region47: #{tpu_custom_call.1} parent=1 // pred_check_branch
      %66 = sbr.rel (0) target = $region49
    $region48: #{tpu_custom_call.1} parent=1 // pred_region
      %68 = vsyncadd [#allocation6], 0
      %s69 = sshll.u32 %s11, 4
      %s70 = int_to_ptr.hbm [resolvable:$true] %s69
      %s71 = sshll.u32 [#allocation7], 4
      %s72 = int_to_ptr.vmem [resolvable:$true] %s71
      %77 = dma.hbm_to_vmem [thread:$0]  %s70, 8192, %s72, [#allocation6], 512, 512, 32
    $region49: #{tpu_custom_call.1} parent=1 // pred_fallthru
      _
    // Predicated region
    $region50: #{tpu_custom_call.1} parent=1 // pred_check
      _
    $region51: #{tpu_custom_call.1} parent=1 // pred_check_branch
      %79 = sbr.rel (0) target = $region53
    $region52: #{tpu_custom_call.1} parent=1 // pred_region
      _
    $region53: #{tpu_custom_call.1} parent=1 // pred_fallthru
      _
    // Predicated region
    $region54: #{tpu_custom_call.1} parent=1 // pred_check
      _
    $region55: #{tpu_custom_call.1} parent=1 // pred_check_branch
      %81 = sbr.rel (0) target = $region57
    $region56: #{tpu_custom_call.1} parent=1 // pred_region
      %83 = dma.done [#allocation3], 10240
    $region57: #{tpu_custom_call.1} parent=1 // pred_fallthru
      _
    // Predicated region
    $region58: #{tpu_custom_call.1} parent=1 // pred_check
      _
    $region59: #{tpu_custom_call.1} parent=1 // pred_check_branch
      %85 = sbr.rel (0) target = $region61
    $region60: #{tpu_custom_call.1} parent=1 // pred_region
      %87 = dma.done [#allocation6], 8192
    $region61: #{tpu_custom_call.1} parent=1 // pred_fallthru
      _
    // Predicated region
    $region62: #{tpu_custom_call.1} parent=1 // pred_check
      _
    $region63: #{tpu_custom_call.1} parent=1 // pred_check_branch
      %89 = sbr.rel (0) target = $region65
    $region64: #{tpu_custom_call.1} parent=1 // pred_region
      %91 = dma.done [#allocation6], 8192
    $region65: #{tpu_custom_call.1} parent=1 // pred_fallthru
      _
    %v93 = vld [vmem:[%s0] sm:$0xff]
    %v94 = vld [vmem:[%s0 + $0x8] sm:$0xff]
    %v95 = vld [vmem:[%s0 + $0x10] sm:$0xff]
    %v96 = vld [vmem:[%s0 + $0x18] sm:$0xff]
    %v97 = vld [vmem:[%s1] sm:$0xff]
    %v98 = vld [vmem:[%s1 + $0x8] sm:$0xff]
    %v99 = vld [vmem:[%s1 + $0x10] sm:$0xff]
    %v100 = vld [vmem:[%s1 + $0x18] sm:$0xff]
    %v101 = vld [vmem:[%s1 + $0x20] sm:$0xff]
    %v102 = vld [vmem:[%s1 + $0x28] sm:$0xff]
    %v103 = vld [vmem:[%s1 + $0x30] sm:$0xff]
    %v104 = vld [vmem:[%s1 + $0x38] sm:$0xff]
    %v105 = vld [vmem:[%s1 + $0x40] sm:$0xff]
    %v106 = vld [vmem:[%s1 + $0x48] sm:$0xff]
    %v107 = vld [vmem:[%s1 + $0x50] sm:$0xff]
    %v108 = vld [vmem:[%s1 + $0x58] sm:$0xff]
    %v109 = vld [vmem:[%s1 + $0x60] sm:$0xff]
    %v110 = vld [vmem:[%s1 + $0x68] sm:$0xff]
    %v111 = vld [vmem:[%s1 + $0x70] sm:$0xff]
    %v112 = vld [vmem:[%s1 + $0x78] sm:$0xff]
    %v113 = vld [vmem:[%s1 + $0x80] sm:$0xff]
    %v114 = vld [vmem:[%s1 + $0x88] sm:$0xff]
    %v115 = vld [vmem:[%s1 + $0x90] sm:$0xff]
    %v116 = vld [vmem:[%s1 + $0x98] sm:$0xff]
    %v117 = vld [vmem:[%s2] sm:$0x1]
    %v119 = vperm.slane %v117, 0
    %vm121 = vcmask 261120
    %v123 = vsel %vm121, %v94, 0
    %v126 = vsel %vm121, %v96, 0
    %128 = vmatpush.msra.mxu0 %v112
    %129 = vmatpush.msra.mxu0 %v111
    %130 = vmatpush.msra.mxu0 %v110
    %131 = vmatpush.msra.mxu0 %v109
    %132 = vmatpush.msra.mxu0 %v108
    %133 = vmatpush.msra.mxu0 %v107
    %134 = vmatpush.msra.mxu0 %v106
    %135 = vmatpush.msra.mxu0 %v105
    %136 = vmatpush.msra.mxu0 %v104
    %137 = vmatpush.msra.mxu0 %v103
    %138 = vmatpush.msra.mxu0 %v102
    %139 = vmatpush.msra.mxu0 %v101
    %140 = vmatpush.msra.mxu0 %v100
    %141 = vmatpush.msra.mxu0 %v99
    %142 = vmatpush.msra.mxu0 %v98
    %143 = vmatpush.msra.mxu0 %v97
    %144 = vmatmul.f32.gmra.mxu0 %v93
    %v145 = vpop.f32.mrf.mxu0
    %v146 = vadd.f32 %v119, %v145
    %147 = vmatmul.f32.gmra.mxu0 %v95
    %v148 = vpop.f32.mrf.mxu0
    %v149 = vadd.f32 %v119, %v148
    %150 = vdwg.mxu0
    %151 = vmatpush.msra.mxu0 0.0
    %152 = vmatpush.msra.mxu0 0.0
    %153 = vmatpush.msra.mxu0 0.0
    %154 = vmatpush.msra.mxu0 0.0
    %155 = vmatpush.msra.mxu0 0.0
    %156 = vmatpush.msra.mxu0 0.0
    %157 = vmatpush.msra.mxu0 0.0
    %158 = vmatpush.msra.mxu0 0.0
    %159 = vmatpush.msra.mxu0 0.0
    %160 = vmatpush.msra.mxu0 0.0
    %161 = vmatpush.msra.mxu0 0.0
    %162 = vmatpush.msra.mxu0 0.0
    %163 = vmatpush.msra.mxu0 %v116
    %164 = vmatpush.msra.mxu0 %v115
    %165 = vmatpush.msra.mxu0 %v114
    %166 = vmatpush.msra.mxu0 %v113
    %167 = vmatmul.f32.gmra.mxu0 %v123
    %v168 = vpop.f32.mrf.mxu0
    %v169 = vadd.f32 %v146, %v168
    %170 = vmatmul.f32.gmra.mxu0 %v126
    %v171 = vpop.f32.mrf.mxu0
    %v172 = vadd.f32 %v149, %v171
    %173 = vdwg.mxu0
    %vm174 = vcmp.gt.f32.partialorder %v169, 0.0
    %vm175 = vcmp.gt.f32.partialorder %v172, 0.0
    %v176 = vmul.f32 %v169, 1.442695
    %v177 = vpow.pop %v176
    %v178 = vmul.f32 %v172, 1.442695
    %v179 = vpow.pop %v178
    %v180 = vsub.f32 %v177, 1.0
    %v181 = vsub.f32 %v179, 1.0
    %v182 = vsel %vm174, %v169, %v180
    %v183 = vsel %vm175, %v172, %v181
    %v184 = vld [vmem:[%s3] sm:$0xff]
    %v185 = vld [vmem:[%s3 + $0x8] sm:$0xff]
    %v186 = vld [vmem:[%s3 + $0x10] sm:$0xff]
    %v187 = vld [vmem:[%s3 + $0x18] sm:$0xff]
    %v188 = vld [vmem:[%s4] sm:$0x1]
    %v190 = vperm.slane %v188, 0
    %v193 = vsel %vm121, %v182, 0
    %v196 = vsel %vm121, %v183, 0
    %198 = vmatpush.msra.mxu0 0.0
    %199 = vmatpush.msra.mxu0 0.0
    %200 = vmatpush.msra.mxu0 0.0
    %201 = vmatpush.msra.mxu0 0.0
    %202 = vmatpush.msra.mxu0 0.0
    %203 = vmatpush.msra.mxu0 0.0
    %204 = vmatpush.msra.mxu0 0.0
    %205 = vmatpush.msra.mxu0 0.0
    %206 = vmatpush.msra.mxu0 0.0
    %207 = vmatpush.msra.mxu0 0.0
    %208 = vmatpush.msra.mxu0 0.0
    %209 = vmatpush.msra.mxu0 0.0
    %210 = vmatpush.msra.mxu0 %v187
    %211 = vmatpush.msra.mxu0 %v186
    %212 = vmatpush.msra.mxu0 %v185
    %213 = vmatpush.msra.mxu0 %v184
    %214 = vmatmul.f32.gmra.mxu0 %v193
    %v215 = vpop.f32.mrf.mxu0
    %v216 = vadd.f32 %v190, %v215
    %217 = vmatmul.f32.gmra.mxu0 %v196
    %v218 = vpop.f32.mrf.mxu0
    %v219 = vadd.f32 %v190, %v218
    %220 = vdwg.mxu0
    %vm221 = vcmp.gt.f32.partialorder %v216, 0.0
    %vm222 = vcmp.gt.f32.partialorder %v219, 0.0
    %v223 = vmul.f32 %v216, 1.442695
    %v224 = vpow.pop %v223
    %v225 = vmul.f32 %v219, 1.442695
    %v226 = vpow.pop %v225
    %v227 = vsub.f32 %v224, 1.0
    %v228 = vsub.f32 %v226, 1.0
    %v229 = vsel %vm221, %v216, %v227
    %v230 = vsel %vm222, %v219, %v228
    %v231 = vld [vmem:[%s5] sm:$0xff]
    %v232 = vld [vmem:[%s5 + $0x8] sm:$0xff]
    %v233 = vld [vmem:[%s5 + $0x10] sm:$0xff]
    %v234 = vld [vmem:[%s5 + $0x18] sm:$0xff]
    %v235 = vld [vmem:[%s6] sm:$0x1]
    %v237 = vperm.slane %v235, 0
    %v240 = vsel %vm121, %v229, 0
    %v243 = vsel %vm121, %v230, 0
    %245 = vmatpush.msra.mxu0 0.0
    %246 = vmatpush.msra.mxu0 0.0
    %247 = vmatpush.msra.mxu0 0.0
    %248 = vmatpush.msra.mxu0 0.0
    %249 = vmatpush.msra.mxu0 0.0
    %250 = vmatpush.msra.mxu0 0.0
    %251 = vmatpush.msra.mxu0 0.0
    %252 = vmatpush.msra.mxu0 0.0
    %253 = vmatpush.msra.mxu0 0.0
    %254 = vmatpush.msra.mxu0 0.0
    %255 = vmatpush.msra.mxu0 0.0
    %256 = vmatpush.msra.mxu0 0.0
    %257 = vmatpush.msra.mxu0 %v234
    %258 = vmatpush.msra.mxu0 %v233
    %259 = vmatpush.msra.mxu0 %v232
    %260 = vmatpush.msra.mxu0 %v231
    %261 = vmatmul.f32.gmra.mxu0 %v240
    %v262 = vpop.f32.mrf.mxu0
    %v263 = vadd.f32 %v237, %v262
    %264 = vmatmul.f32.gmra.mxu0 %v243
    %v265 = vpop.f32.mrf.mxu0
    %v266 = vadd.f32 %v237, %v265
    %267 = vdwg.mxu0
    %vm268 = vcmask 64512
    %v269 = vsel %vm268, %v263, -inf
    %270 = vmax.xlane.f32.xlu0 %v269
    %v271 = vpop.xlane.xlu0 %270
    %v272 = vsel %vm268, %v266, -inf
    %273 = vmax.xlane.f32.xlu0 %v272
    %v274 = vpop.xlane.xlu0 %273
    %v275 = vsub.f32 %v263, %v271
    %v276 = vsub.f32 %v266, %v274
    %v277 = vmul.f32 %v275, 1.442695
    %v278 = vpow.pop %v277
    %v279 = vmul.f32 %v276, 1.442695
    %v280 = vpow.pop %v279
    %v281 = vsel %vm268, %v278, 0.0
    %282 = vadd.xlane.f32.xlu0 %v281
    %v283 = vpop.xlane.xlu0 %282
    %v284 = vsel %vm268, %v280, 0.0
    %285 = vadd.xlane.f32.xlu0 %v284
    %v286 = vpop.xlane.xlu0 %285
    %v287 = vrcp.pop %v283
    %v288 = vrcp.pop %v286
    %v289 = vmul.f32 %v278, %v287
    %v290 = vmul.f32 %v280, %v288
    %v291 = vpack.c.bf16 %v95, %v93
    %v292 = vpack.c.bf16 %v96, %v94
    %v293 = vld [vmem:[#allocation2] sm:$0xff]
    %v294 = vld [vmem:[#allocation2 + $0x8] sm:$0xff]
    %v295 = vld [vmem:[#allocation2 + $0x10] sm:$0xff]
    %v296 = vld [vmem:[#allocation2 + $0x18] sm:$0xff]
    %v297 = vld [vmem:[#allocation2 + $0x20] sm:$0xff]
    %v298 = vld [vmem:[#allocation2 + $0x28] sm:$0xff]
    %v299 = vld [vmem:[#allocation2 + $0x30] sm:$0xff]
    %v300 = vld [vmem:[#allocation2 + $0x38] sm:$0xff]
    %v301 = vld [vmem:[#allocation2 + $0x40] sm:$0xff]
    %v302 = vld [vmem:[#allocation2 + $0x48] sm:$0xff]
    %v303 = vld [vmem:[#allocation2 + $0x50] sm:$0xff]
    %v304 = vld [vmem:[#allocation2 + $0x58] sm:$0xff]
    %v305 = vld [vmem:[#allocation2 + $0x60] sm:$0xff]
    %v306 = vld [vmem:[#allocation2 + $0x68] sm:$0xff]
    %v307 = vld [vmem:[#allocation2 + $0x70] sm:$0xff]
    %v308 = vld [vmem:[#allocation2 + $0x78] sm:$0xff]
    %v309 = vld [vmem:[#allocation2 + $0x80] sm:$0xff]
    %v310 = vld [vmem:[#allocation2 + $0x88] sm:$0xff]
    %v311 = vld [vmem:[#allocation2 + $0x90] sm:$0xff]
    %v312 = vld [vmem:[#allocation2 + $0x98] sm:$0xff]
    %v313 = vld [vmem:[#allocation2 + $0xa0] sm:$0xff]
    %v314 = vld [vmem:[#allocation2 + $0xa8] sm:$0xff]
    %v315 = vld [vmem:[#allocation2 + $0xb0] sm:$0xff]
    %v316 = vld [vmem:[#allocation2 + $0xb8] sm:$0xff]
    %v317 = vld [vmem:[#allocation2 + $0xc0] sm:$0xff]
    %v318 = vld [vmem:[#allocation2 + $0xc8] sm:$0xff]
    %v319 = vld [vmem:[#allocation2 + $0xd0] sm:$0xff]
    %v320 = vld [vmem:[#allocation2 + $0xd8] sm:$0xff]
    %v321 = vld [vmem:[#allocation2 + $0xe0] sm:$0xff]
    %v322 = vld [vmem:[#allocation2 + $0xe8] sm:$0xff]
    %v323 = vld [vmem:[#allocation2 + $0xf0] sm:$0xff]
    %v324 = vld [vmem:[#allocation2 + $0xf8] sm:$0xff]
    %v325 = vld [vmem:[#allocation2 + $0x100] sm:$0xff]
    %v326 = vld [vmem:[#allocation2 + $0x108] sm:$0xff]
    %v327 = vld [vmem:[#allocation2 + $0x110] sm:$0xff]
    %v328 = vld [vmem:[#allocation2 + $0x118] sm:$0xff]
    %v329 = vld [vmem:[#allocation2 + $0x120] sm:$0xff]
    %v330 = vld [vmem:[#allocation2 + $0x128] sm:$0xff]
    %v331 = vld [vmem:[#allocation2 + $0x130] sm:$0xff]
    %v332 = vld [vmem:[#allocation2 + $0x138] sm:$0xff]
    %v333 = vld [vmem:[#allocation2 + $0x140] sm:$0xff]
    %v334 = vld [vmem:[#allocation2 + $0x148] sm:$0xff]
    %v335 = vld [vmem:[#allocation2 + $0x150] sm:$0xff]
    %v336 = vld [vmem:[#allocation2 + $0x158] sm:$0xff]
    %v337 = vld [vmem:[#allocation2 + $0x160] sm:$0xff]
    %v338 = vld [vmem:[#allocation2 + $0x168] sm:$0xff]
    %v339 = vld [vmem:[#allocation2 + $0x170] sm:$0xff]
    %v340 = vld [vmem:[#allocation2 + $0x178] sm:$0xff]
    %v341 = vld [vmem:[#allocation2 + $0x180] sm:$0xff]
    %v342 = vld [vmem:[#allocation2 + $0x188] sm:$0xff]
    %v343 = vld [vmem:[#allocation2 + $0x190] sm:$0xff]
    %v344 = vld [vmem:[#allocation2 + $0x198] sm:$0xff]
    %v345 = vld [vmem:[#allocation2 + $0x1a0] sm:$0xff]
    %v346 = vld [vmem:[#allocation2 + $0x1a8] sm:$0xff]
    %v347 = vld [vmem:[#allocation2 + $0x1b0] sm:$0xff]
    %v348 = vld [vmem:[#allocation2 + $0x1b8] sm:$0xff]
    %v349 = vld [vmem:[#allocation2 + $0x1c0] sm:$0xff]
    %v350 = vld [vmem:[#allocation2 + $0x1c8] sm:$0xff]
    %v351 = vld [vmem:[#allocation2 + $0x1d0] sm:$0xff]
    %v352 = vld [vmem:[#allocation2 + $0x1d8] sm:$0xff]
    %v353 = vld [vmem:[#allocation2 + $0x1e0] sm:$0xff]
    %v354 = vld [vmem:[#allocation2 + $0x1e8] sm:$0xff]
    %v355 = vld [vmem:[#allocation2 + $0x1f0] sm:$0xff]
    %v356 = vld [vmem:[#allocation2 + $0x1f8] sm:$0xff]
    %v357 = vld [vmem:[#allocation2 + $0x200] sm:$0xff]
    %v358 = vld [vmem:[#allocation2 + $0x208] sm:$0xff]
    %v359 = vld [vmem:[#allocation2 + $0x210] sm:$0xff]
    %v360 = vld [vmem:[#allocation2 + $0x218] sm:$0xff]
    %v361 = vld [vmem:[#allocation2 + $0x220] sm:$0xff]
    %v362 = vld [vmem:[#allocation2 + $0x228] sm:$0xff]
    %v363 = vld [vmem:[#allocation2 + $0x230] sm:$0xff]
    %v364 = vld [vmem:[#allocation2 + $0x238] sm:$0xff]
    %v365 = vld [vmem:[#allocation2 + $0x240] sm:$0xff]
    %v366 = vld [vmem:[#allocation2 + $0x248] sm:$0xff]
    %v367 = vld [vmem:[#allocation2 + $0x250] sm:$0xff]
    %v368 = vld [vmem:[#allocation2 + $0x258] sm:$0xff]
    %v369 = vld [vmem:[#allocation2 + $0x260] sm:$0xff]
    %v370 = vld [vmem:[#allocation2 + $0x268] sm:$0xff]
    %v371 = vld [vmem:[#allocation2 + $0x270] sm:$0xff]
    %v372 = vld [vmem:[#allocation2 + $0x278] sm:$0xff]
    %v453 = vunpack.c.l.b16 %v293
    %v454 = vunpack.c.h.b16 %v293
    %v455 = vunpack.c.l.b16 %v294
    %v456 = vunpack.c.h.b16 %v294
    %v457 = vunpack.c.l.b16 %v295
    %v458 = vunpack.c.h.b16 %v295
    %v459 = vunpack.c.l.b16 %v296
    %v460 = vunpack.c.h.b16 %v296
    %v461 = vunpack.c.l.b16 %v297
    %v462 = vunpack.c.h.b16 %v297
    %v463 = vunpack.c.l.b16 %v298
    %v464 = vunpack.c.h.b16 %v298
    %v465 = vunpack.c.l.b16 %v299
    %v466 = vunpack.c.h.b16 %v299
    %v467 = vunpack.c.l.b16 %v300
    %v468 = vunpack.c.h.b16 %v300
    %v469 = vunpack.c.l.b16 %v301
    %v470 = vunpack.c.h.b16 %v301
    %v471 = vunpack.c.l.b16 %v302
    %v472 = vunpack.c.h.b16 %v302
    %v473 = vunpack.c.l.b16 %v303
    %v474 = vunpack.c.h.b16 %v303
    %v475 = vunpack.c.l.b16 %v304
    %v476 = vunpack.c.h.b16 %v304
    %v477 = vunpack.c.l.b16 %v305
    %v478 = vunpack.c.h.b16 %v305
    %v479 = vunpack.c.l.b16 %v306
    %v480 = vunpack.c.h.b16 %v306
    %v481 = vunpack.c.l.b16 %v307
    %v482 = vunpack.c.h.b16 %v307
    %v483 = vunpack.c.l.b16 %v308
    %v484 = vunpack.c.h.b16 %v308
    %v485 = vunpack.c.l.b16 %v309
    %v486 = vunpack.c.h.b16 %v309
    %v487 = vunpack.c.l.b16 %v310
    %v488 = vunpack.c.h.b16 %v310
    %v489 = vunpack.c.l.b16 %v311
    %v490 = vunpack.c.h.b16 %v311
    %v491 = vunpack.c.l.b16 %v312
    %v492 = vunpack.c.h.b16 %v312
    %v493 = vunpack.c.l.b16 %v313
    %v494 = vunpack.c.h.b16 %v313
    %v495 = vunpack.c.l.b16 %v314
    %v496 = vunpack.c.h.b16 %v314
    %v497 = vunpack.c.l.b16 %v315
    %v498 = vunpack.c.h.b16 %v315
    %v499 = vunpack.c.l.b16 %v316
    %v500 = vunpack.c.h.b16 %v316
    %v501 = vunpack.c.l.b16 %v317
    %v502 = vunpack.c.h.b16 %v317
    %v503 = vunpack.c.l.b16 %v318
    %v504 = vunpack.c.h.b16 %v318
    %v505 = vunpack.c.l.b16 %v319
    %v506 = vunpack.c.h.b16 %v319
    %v507 = vunpack.c.l.b16 %v320
    %v508 = vunpack.c.h.b16 %v320
    %v509 = vunpack.c.l.b16 %v321
    %v510 = vunpack.c.h.b16 %v321
    %v511 = vunpack.c.l.b16 %v322
    %v512 = vunpack.c.h.b16 %v322
    %v513 = vunpack.c.l.b16 %v323
    %v514 = vunpack.c.h.b16 %v323
    %v515 = vunpack.c.l.b16 %v324
    %v516 = vunpack.c.h.b16 %v324
    %v517 = vunpack.c.l.b16 %v325
    %v518 = vunpack.c.h.b16 %v325
    %v519 = vunpack.c.l.b16 %v326
    %v520 = vunpack.c.h.b16 %v326
    %v521 = vunpack.c.l.b16 %v327
    %v522 = vunpack.c.h.b16 %v327
    %v523 = vunpack.c.l.b16 %v328
    %v524 = vunpack.c.h.b16 %v328
    %v525 = vunpack.c.l.b16 %v329
    %v526 = vunpack.c.h.b16 %v329
    %v527 = vunpack.c.l.b16 %v330
    %v528 = vunpack.c.h.b16 %v330
    %v529 = vunpack.c.l.b16 %v331
    %v530 = vunpack.c.h.b16 %v331
    %v531 = vunpack.c.l.b16 %v332
    %v532 = vunpack.c.h.b16 %v332
    %v533 = vunpack.c.l.b16 %v333
    %v534 = vunpack.c.h.b16 %v333
    %v535 = vunpack.c.l.b16 %v334
    %v536 = vunpack.c.h.b16 %v334
    %v537 = vunpack.c.l.b16 %v335
    %v538 = vunpack.c.h.b16 %v335
    %v539 = vunpack.c.l.b16 %v336
    %v540 = vunpack.c.h.b16 %v336
    %v541 = vunpack.c.l.b16 %v337
    %v542 = vunpack.c.h.b16 %v337
    %v543 = vunpack.c.l.b16 %v338
    %v544 = vunpack.c.h.b16 %v338
    %v545 = vunpack.c.l.b16 %v339
    %v546 = vunpack.c.h.b16 %v339
    %v547 = vunpack.c.l.b16 %v340
    %v548 = vunpack.c.h.b16 %v340
    %v549 = vunpack.c.l.b16 %v341
    %v550 = vunpack.c.h.b16 %v341
    %v551 = vunpack.c.l.b16 %v342
    %v552 = vunpack.c.h.b16 %v342
    %v553 = vunpack.c.l.b16 %v343
    %v554 = vunpack.c.h.b16 %v343
    %v555 = vunpack.c.l.b16 %v344
    %v556 = vunpack.c.h.b16 %v344
    %v557 = vunpack.c.l.b16 %v345
    %v558 = vunpack.c.h.b16 %v345
    %v559 = vunpack.c.l.b16 %v346
    %v560 = vunpack.c.h.b16 %v346
    %v561 = vunpack.c.l.b16 %v347
    %v562 = vunpack.c.h.b16 %v347
    %v563 = vunpack.c.l.b16 %v348
    %v564 = vunpack.c.h.b16 %v348
    %v565 = vunpack.c.l.b16 %v349
    %v566 = vunpack.c.h.b16 %v349
    %v567 = vunpack.c.l.b16 %v350
    %v568 = vunpack.c.h.b16 %v350
    %v569 = vunpack.c.l.b16 %v351
    %v570 = vunpack.c.h.b16 %v351
    %v571 = vunpack.c.l.b16 %v352
    %v572 = vunpack.c.h.b16 %v352
    %v573 = vunpack.c.l.b16 %v353
    %v574 = vunpack.c.h.b16 %v353
    %v575 = vunpack.c.l.b16 %v354
    %v576 = vunpack.c.h.b16 %v354
    %v577 = vunpack.c.l.b16 %v355
    %v578 = vunpack.c.h.b16 %v355
    %v579 = vunpack.c.l.b16 %v356
    %v580 = vunpack.c.h.b16 %v356
    %v581 = vunpack.c.l.b16 %v357
    %v582 = vunpack.c.h.b16 %v357
    %v583 = vunpack.c.l.b16 %v358
    %v584 = vunpack.c.h.b16 %v358
    %v585 = vunpack.c.l.b16 %v359
    %v586 = vunpack.c.h.b16 %v359
    %v587 = vunpack.c.l.b16 %v360
    %v588 = vunpack.c.h.b16 %v360
    %v589 = vunpack.c.l.b16 %v361
    %v590 = vunpack.c.h.b16 %v361
    %v591 = vunpack.c.l.b16 %v362
    %v592 = vunpack.c.h.b16 %v362
    %v593 = vunpack.c.l.b16 %v363
    %v594 = vunpack.c.h.b16 %v363
    %v595 = vunpack.c.l.b16 %v364
    %v596 = vunpack.c.h.b16 %v364
    %v597 = vunpack.c.l.b16 %v365
    %v598 = vunpack.c.h.b16 %v365
    %v599 = vunpack.c.l.b16 %v366
    %v600 = vunpack.c.h.b16 %v366
    %v601 = vunpack.c.l.b16 %v367
    %v602 = vunpack.c.h.b16 %v367
    %v603 = vunpack.c.l.b16 %v368
    %v604 = vunpack.c.h.b16 %v368
    %v605 = vunpack.c.l.b16 %v369
    %v606 = vunpack.c.h.b16 %v369
    %v607 = vunpack.c.l.b16 %v370
    %v608 = vunpack.c.h.b16 %v370
    %v609 = vunpack.c.l.b16 %v371
    %v610 = vunpack.c.h.b16 %v371
    %v611 = vunpack.c.l.b16 %v372
    %v612 = vunpack.c.h.b16 %v372
    %v613 = vpack.c.b16 %v461, %v453
    %v614 = vpack.c.b16 %v462, %v454
    %v615 = vpack.c.b16 %v463, %v455
    %v616 = vpack.c.b16 %v464, %v456
    %v617 = vpack.c.b16 %v465, %v457
    %v618 = vpack.c.b16 %v466, %v458
    %v619 = vpack.c.b16 %v467, %v459
    %v620 = vpack.c.b16 %v468, %v460
    %v621 = vpack.c.b16 %v477, %v469
    %v622 = vpack.c.b16 %v478, %v470
    %v623 = vpack.c.b16 %v479, %v471
    %v624 = vpack.c.b16 %v480, %v472
    %v625 = vpack.c.b16 %v481, %v473
    %v626 = vpack.c.b16 %v482, %v474
    %v627 = vpack.c.b16 %v483, %v475
    %v628 = vpack.c.b16 %v484, %v476
    %v629 = vpack.c.b16 %v493, %v485
    %v630 = vpack.c.b16 %v494, %v486
    %v631 = vpack.c.b16 %v495, %v487
    %v632 = vpack.c.b16 %v496, %v488
    %v633 = vpack.c.b16 %v497, %v489
    %v634 = vpack.c.b16 %v498, %v490
    %v635 = vpack.c.b16 %v499, %v491
    %v636 = vpack.c.b16 %v500, %v492
    %v637 = vpack.c.b16 %v509, %v501
    %v638 = vpack.c.b16 %v510, %v502
    %v639 = vpack.c.b16 %v511, %v503
    %v640 = vpack.c.b16 %v512, %v504
    %v641 = vpack.c.b16 %v513, %v505
    %v642 = vpack.c.b16 %v514, %v506
    %v643 = vpack.c.b16 %v515, %v507
    %v644 = vpack.c.b16 %v516, %v508
    %v645 = vpack.c.b16 %v525, %v517
    %v646 = vpack.c.b16 %v526, %v518
    %v647 = vpack.c.b16 %v527, %v519
    %v648 = vpack.c.b16 %v528, %v520
    %v649 = vpack.c.b16 %v529, %v521
    %v650 = vpack.c.b16 %v530, %v522
    %v651 = vpack.c.b16 %v531, %v523
    %v652 = vpack.c.b16 %v532, %v524
    %v653 = vpack.c.b16 %v541, %v533
    %v654 = vpack.c.b16 %v542, %v534
    %v655 = vpack.c.b16 %v543, %v535
    %v656 = vpack.c.b16 %v544, %v536
    %v657 = vpack.c.b16 %v545, %v537
    %v658 = vpack.c.b16 %v546, %v538
    %v659 = vpack.c.b16 %v547, %v539
    %v660 = vpack.c.b16 %v548, %v540
    %v661 = vpack.c.b16 %v557, %v549
    %v662 = vpack.c.b16 %v558, %v550
    %v663 = vpack.c.b16 %v559, %v551
    %v664 = vpack.c.b16 %v560, %v552
    %v665 = vpack.c.b16 %v561, %v553
    %v666 = vpack.c.b16 %v562, %v554
    %v667 = vpack.c.b16 %v563, %v555
    %v668 = vpack.c.b16 %v564, %v556
    %v669 = vpack.c.b16 %v573, %v565
    %v670 = vpack.c.b16 %v574, %v566
    %v671 = vpack.c.b16 %v575, %v567
    %v672 = vpack.c.b16 %v576, %v568
    %v673 = vpack.c.b16 %v577, %v569
    %v674 = vpack.c.b16 %v578, %v570
    %v675 = vpack.c.b16 %v579, %v571
    %v676 = vpack.c.b16 %v580, %v572
    %v677 = vpack.c.b16 %v589, %v581
    %v678 = vpack.c.b16 %v590, %v582
    %v679 = vpack.c.b16 %v591, %v583
    %v680 = vpack.c.b16 %v592, %v584
    %v681 = vpack.c.b16 %v593, %v585
    %v682 = vpack.c.b16 %v594, %v586
    %v683 = vpack.c.b16 %v595, %v587
    %v684 = vpack.c.b16 %v596, %v588
    %v685 = vpack.c.b16 %v605, %v597
    %v686 = vpack.c.b16 %v606, %v598
    %v687 = vpack.c.b16 %v607, %v599
    %v688 = vpack.c.b16 %v608, %v600
    %v689 = vpack.c.b16 %v609, %v601
    %v690 = vpack.c.b16 %v610, %v602
    %v691 = vpack.c.b16 %v611, %v603
    %v692 = vpack.c.b16 %v612, %v604
    %v774 = vsel %vm121, %v292, 0
    %776 = vmatpush.bf16.msra.mxu0 %v669
    %777 = vmatpush.bf16.msra.mxu0 %v661
    %778 = vmatpush.bf16.msra.mxu0 %v653
    %779 = vmatpush.bf16.msra.mxu0 %v645
    %780 = vmatpush.bf16.msra.mxu0 %v637
    %781 = vmatpush.bf16.msra.mxu0 %v629
    %782 = vmatpush.bf16.msra.mxu0 %v621
    %783 = vmatpush.bf16.msra.mxu0 %v613
    %784 = vmatmul.bf16.gmra.mxu0 %v291
    %v785 = vpop.f32.mrf.mxu0
    %v786 = vadd.f32 0.0, %v785
    %v787 = vpop.f32.mrf.mxu0
    %v788 = vadd.f32 0.0, %v787
    %789 = vdwg.mxu0
    %790 = vmatpush.bf16.msra.mxu0 0
    %791 = vmatpush.bf16.msra.mxu0 0
    %792 = vmatpush.bf16.msra.mxu0 0
    %793 = vmatpush.bf16.msra.mxu0 0
    %794 = vmatpush.bf16.msra.mxu0 0
    %795 = vmatpush.bf16.msra.mxu0 0
    %796 = vmatpush.bf16.msra.mxu0 %v685
    %797 = vmatpush.bf16.msra.mxu0 %v677
    %798 = vmatmul.bf16.gmra.mxu0 %v774
    %v799 = vpop.f32.mrf.mxu0
    %v800 = vadd.f32 %v786, %v799
    %v801 = vpop.f32.mrf.mxu0
    %v802 = vadd.f32 %v788, %v801
    %803 = vdwg.mxu0
    %804 = vmatpush.bf16.msra.mxu0 %v670
    %805 = vmatpush.bf16.msra.mxu0 %v662
    %806 = vmatpush.bf16.msra.mxu0 %v654
    %807 = vmatpush.bf16.msra.mxu0 %v646
    %808 = vmatpush.bf16.msra.mxu0 %v638
    %809 = vmatpush.bf16.msra.mxu0 %v630
    %810 = vmatpush.bf16.msra.mxu0 %v622
    %811 = vmatpush.bf16.msra.mxu0 %v614
    %812 = vmatmul.bf16.gmra.mxu0 %v291
    %v813 = vpop.f32.mrf.mxu0
    %v814 = vadd.f32 0.0, %v813
    %v815 = vpop.f32.mrf.mxu0
    %v816 = vadd.f32 0.0, %v815
    %817 = vdwg.mxu0
    %818 = vmatpush.bf16.msra.mxu0 0
    %819 = vmatpush.bf16.msra.mxu0 0
    %820 = vmatpush.bf16.msra.mxu0 0
    %821 = vmatpush.bf16.msra.mxu0 0
    %822 = vmatpush.bf16.msra.mxu0 0
    %823 = vmatpush.bf16.msra.mxu0 0
    %824 = vmatpush.bf16.msra.mxu0 %v686
    %825 = vmatpush.bf16.msra.mxu0 %v678
    %826 = vmatmul.bf16.gmra.mxu0 %v774
    %v827 = vpop.f32.mrf.mxu0
    %v828 = vadd.f32 %v814, %v827
    %v829 = vpop.f32.mrf.mxu0
    %v830 = vadd.f32 %v816, %v829
    %831 = vdwg.mxu0
    %832 = vmatpush.bf16.msra.mxu0 %v671
    %833 = vmatpush.bf16.msra.mxu0 %v663
    %834 = vmatpush.bf16.msra.mxu0 %v655
    %835 = vmatpush.bf16.msra.mxu0 %v647
    %836 = vmatpush.bf16.msra.mxu0 %v639
    %837 = vmatpush.bf16.msra.mxu0 %v631
    %838 = vmatpush.bf16.msra.mxu0 %v623
    %839 = vmatpush.bf16.msra.mxu0 %v615
    %840 = vmatmul.bf16.gmra.mxu0 %v291
    %v841 = vpop.f32.mrf.mxu0
    %v842 = vadd.f32 0.0, %v841
    %v843 = vpop.f32.mrf.mxu0
    %v844 = vadd.f32 0.0, %v843
    %845 = vdwg.mxu0
    %846 = vmatpush.bf16.msra.mxu0 0
    %847 = vmatpush.bf16.msra.mxu0 0
    %848 = vmatpush.bf16.msra.mxu0 0
    %849 = vmatpush.bf16.msra.mxu0 0
    %850 = vmatpush.bf16.msra.mxu0 0
    %851 = vmatpush.bf16.msra.mxu0 0
    %852 = vmatpush.bf16.msra.mxu0 %v687
    %853 = vmatpush.bf16.msra.mxu0 %v679
    %854 = vmatmul.bf16.gmra.mxu0 %v774
    %v855 = vpop.f32.mrf.mxu0
    %v856 = vadd.f32 %v842, %v855
    %v857 = vpop.f32.mrf.mxu0
    %v858 = vadd.f32 %v844, %v857
    %859 = vdwg.mxu0
    %860 = vmatpush.bf16.msra.mxu0 %v672
    %861 = vmatpush.bf16.msra.mxu0 %v664
    %862 = vmatpush.bf16.msra.mxu0 %v656
    %863 = vmatpush.bf16.msra.mxu0 %v648
    %864 = vmatpush.bf16.msra.mxu0 %v640
    %865 = vmatpush.bf16.msra.mxu0 %v632
    %866 = vmatpush.bf16.msra.mxu0 %v624
    %867 = vmatpush.bf16.msra.mxu0 %v616
    %868 = vmatmul.bf16.gmra.mxu0 %v291
    %v869 = vpop.f32.mrf.mxu0
    %v870 = vadd.f32 0.0, %v869
    %v871 = vpop.f32.mrf.mxu0
    %v872 = vadd.f32 0.0, %v871
    %873 = vdwg.mxu0
    %874 = vmatpush.bf16.msra.mxu0 0
    %875 = vmatpush.bf16.msra.mxu0 0
    %876 = vmatpush.bf16.msra.mxu0 0
    %877 = vmatpush.bf16.msra.mxu0 0
    %878 = vmatpush.bf16.msra.mxu0 0
    %879 = vmatpush.bf16.msra.mxu0 0
    %880 = vmatpush.bf16.msra.mxu0 %v688
    %881 = vmatpush.bf16.msra.mxu0 %v680
    %882 = vmatmul.bf16.gmra.mxu0 %v774
    %v883 = vpop.f32.mrf.mxu0
    %v884 = vadd.f32 %v870, %v883
    %v885 = vpop.f32.mrf.mxu0
    %v886 = vadd.f32 %v872, %v885
    %887 = vdwg.mxu0
    %888 = vmatpush.bf16.msra.mxu0 %v673
    %889 = vmatpush.bf16.msra.mxu0 %v665
    %890 = vmatpush.bf16.msra.mxu0 %v657
    %891 = vmatpush.bf16.msra.mxu0 %v649
    %892 = vmatpush.bf16.msra.mxu0 %v641
    %893 = vmatpush.bf16.msra.mxu0 %v633
    %894 = vmatpush.bf16.msra.mxu0 %v625
    %895 = vmatpush.bf16.msra.mxu0 %v617
    %896 = vmatmul.bf16.gmra.mxu0 %v291
    %v897 = vpop.f32.mrf.mxu0
    %v898 = vadd.f32 0.0, %v897
    %v899 = vpop.f32.mrf.mxu0
    %v900 = vadd.f32 0.0, %v899
    %901 = vdwg.mxu0
    %902 = vmatpush.bf16.msra.mxu0 0
    %903 = vmatpush.bf16.msra.mxu0 0
    %904 = vmatpush.bf16.msra.mxu0 0
    %905 = vmatpush.bf16.msra.mxu0 0
    %906 = vmatpush.bf16.msra.mxu0 0
    %907 = vmatpush.bf16.msra.mxu0 0
    %908 = vmatpush.bf16.msra.mxu0 %v689
    %909 = vmatpush.bf16.msra.mxu0 %v681
    %910 = vmatmul.bf16.gmra.mxu0 %v774
    %v911 = vpop.f32.mrf.mxu0
    %v912 = vadd.f32 %v898, %v911
    %v913 = vpop.f32.mrf.mxu0
    %v914 = vadd.f32 %v900, %v913
    %915 = vdwg.mxu0
    %916 = vmatpush.bf16.msra.mxu0 %v674
    %917 = vmatpush.bf16.msra.mxu0 %v666
    %918 = vmatpush.bf16.msra.mxu0 %v658
    %919 = vmatpush.bf16.msra.mxu0 %v650
    %920 = vmatpush.bf16.msra.mxu0 %v642
    %921 = vmatpush.bf16.msra.mxu0 %v634
    %922 = vmatpush.bf16.msra.mxu0 %v626
    %923 = vmatpush.bf16.msra.mxu0 %v618
    %924 = vmatmul.bf16.gmra.mxu0 %v291
    %v925 = vpop.f32.mrf.mxu0
    %v926 = vadd.f32 0.0, %v925
    %v927 = vpop.f32.mrf.mxu0
    %v928 = vadd.f32 0.0, %v927
    %929 = vdwg.mxu0
    %930 = vmatpush.bf16.msra.mxu0 0
    %931 = vmatpush.bf16.msra.mxu0 0
    %932 = vmatpush.bf16.msra.mxu0 0
    %933 = vmatpush.bf16.msra.mxu0 0
    %934 = vmatpush.bf16.msra.mxu0 0
    %935 = vmatpush.bf16.msra.mxu0 0
    %936 = vmatpush.bf16.msra.mxu0 %v690
    %937 = vmatpush.bf16.msra.mxu0 %v682
    %938 = vmatmul.bf16.gmra.mxu0 %v774
    %v939 = vpop.f32.mrf.mxu0
    %v940 = vadd.f32 %v926, %v939
    %v941 = vpop.f32.mrf.mxu0
    %v942 = vadd.f32 %v928, %v941
    %943 = vdwg.mxu0
    %944 = vmatpush.bf16.msra.mxu0 %v675
    %945 = vmatpush.bf16.msra.mxu0 %v667
    %946 = vmatpush.bf16.msra.mxu0 %v659
    %947 = vmatpush.bf16.msra.mxu0 %v651
    %948 = vmatpush.bf16.msra.mxu0 %v643
    %949 = vmatpush.bf16.msra.mxu0 %v635
    %950 = vmatpush.bf16.msra.mxu0 %v627
    %951 = vmatpush.bf16.msra.mxu0 %v619
    %952 = vmatmul.bf16.gmra.mxu0 %v291
    %v953 = vpop.f32.mrf.mxu0
    %v954 = vadd.f32 0.0, %v953
    %v955 = vpop.f32.mrf.mxu0
    %v956 = vadd.f32 0.0, %v955
    %957 = vdwg.mxu0
    %958 = vmatpush.bf16.msra.mxu0 0
    %959 = vmatpush.bf16.msra.mxu0 0
    %960 = vmatpush.bf16.msra.mxu0 0
    %961 = vmatpush.bf16.msra.mxu0 0
    %962 = vmatpush.bf16.msra.mxu0 0
    %963 = vmatpush.bf16.msra.mxu0 0
    %964 = vmatpush.bf16.msra.mxu0 %v691
    %965 = vmatpush.bf16.msra.mxu0 %v683
    %966 = vmatmul.bf16.gmra.mxu0 %v774
    %v967 = vpop.f32.mrf.mxu0
    %v968 = vadd.f32 %v954, %v967
    %v969 = vpop.f32.mrf.mxu0
    %v970 = vadd.f32 %v956, %v969
    %971 = vdwg.mxu0
    %972 = vmatpush.bf16.msra.mxu0 %v676
    %973 = vmatpush.bf16.msra.mxu0 %v668
    %974 = vmatpush.bf16.msra.mxu0 %v660
    %975 = vmatpush.bf16.msra.mxu0 %v652
    %976 = vmatpush.bf16.msra.mxu0 %v644
    %977 = vmatpush.bf16.msra.mxu0 %v636
    %978 = vmatpush.bf16.msra.mxu0 %v628
    %979 = vmatpush.bf16.msra.mxu0 %v620
    %980 = vmatmul.bf16.gmra.mxu0 %v291
    %v981 = vpop.f32.mrf.mxu0
    %v982 = vadd.f32 0.0, %v981
    %v983 = vpop.f32.mrf.mxu0
    %v984 = vadd.f32 0.0, %v983
    %985 = vdwg.mxu0
    %986 = vmatpush.bf16.msra.mxu0 0
    %987 = vmatpush.bf16.msra.mxu0 0
    %988 = vmatpush.bf16.msra.mxu0 0
    %989 = vmatpush.bf16.msra.mxu0 0
    %990 = vmatpush.bf16.msra.mxu0 0
    %991 = vmatpush.bf16.msra.mxu0 0
    %992 = vmatpush.bf16.msra.mxu0 %v692
    %993 = vmatpush.bf16.msra.mxu0 %v684
    %994 = vmatmul.bf16.gmra.mxu0 %v774
    %v995 = vpop.f32.mrf.mxu0
    %v996 = vadd.f32 %v982, %v995
    %v997 = vpop.f32.mrf.mxu0
    %v998 = vadd.f32 %v984, %v997
    %999 = vdwg.mxu0
    %1001 = vset.pattern.permute.xlu0 0
    %1002 = vperm.xlu0 %1001, %v289
    %v1003 = vpop.permute.xlu0 %1002
    %1006 = vset.pattern.permute.xlu0 0
    %1007 = vperm.xlu0 %1006, %v290
    %v1008 = vpop.permute.xlu0 %1007
    %1010 = vset.pattern.permute.xlu0 1
    %1011 = vperm.xlu0 %1010, %v289
    %v1012 = vpop.permute.xlu0 %1011
    %1014 = vset.pattern.permute.xlu0 1
    %1015 = vperm.xlu0 %1014, %v290
    %v1016 = vpop.permute.xlu0 %1015
    %1018 = vset.pattern.permute.xlu0 2
    %1019 = vperm.xlu0 %1018, %v289
    %v1020 = vpop.permute.xlu0 %1019
    %1022 = vset.pattern.permute.xlu0 2
    %1023 = vperm.xlu0 %1022, %v290
    %v1024 = vpop.permute.xlu0 %1023
    %1026 = vset.pattern.permute.xlu0 3
    %1027 = vperm.xlu0 %1026, %v289
    %v1028 = vpop.permute.xlu0 %1027
    %1030 = vset.pattern.permute.xlu0 3
    %1031 = vperm.xlu0 %1030, %v290
    %v1032 = vpop.permute.xlu0 %1031
    %1034 = vset.pattern.permute.xlu0 4
    %1035 = vperm.xlu0 %1034, %v289
    %v1036 = vpop.permute.xlu0 %1035
    %1038 = vset.pattern.permute.xlu0 4
    %1039 = vperm.xlu0 %1038, %v290
    %v1040 = vpop.permute.xlu0 %1039
    %1042 = vset.pattern.permute.xlu0 5
    %1043 = vperm.xlu0 %1042, %v289
    %v1044 = vpop.permute.xlu0 %1043
    %1046 = vset.pattern.permute.xlu0 5
    %1047 = vperm.xlu0 %1046, %v290
    %v1048 = vpop.permute.xlu0 %1047
    %1050 = vset.pattern.permute.xlu0 6
    %1051 = vperm.xlu0 %1050, %v289
    %v1052 = vpop.permute.xlu0 %1051
    %1054 = vset.pattern.permute.xlu0 6
    %1055 = vperm.xlu0 %1054, %v290
    %v1056 = vpop.permute.xlu0 %1055
    %1058 = vset.pattern.permute.xlu0 7
    %1059 = vperm.xlu0 %1058, %v289
    %v1060 = vpop.permute.xlu0 %1059
    %1062 = vset.pattern.permute.xlu0 7
    %1063 = vperm.xlu0 %1062, %v290
    %v1064 = vpop.permute.xlu0 %1063
    %v1066 = vmul.f32 %v1003, %v800
    %v1067 = vmul.f32 %v1008, %v802
    %v1068 = vmul.f32 %v1012, %v828
    %v1069 = vmul.f32 %v1016, %v830
    %v1070 = vadd.f32 %v1066, %v1068
    %v1071 = vadd.f32 %v1067, %v1069
    %v1072 = vmul.f32 %v1020, %v856
    %v1073 = vmul.f32 %v1024, %v858
    %v1074 = vadd.f32 %v1070, %v1072
    %v1075 = vadd.f32 %v1071, %v1073
    %v1076 = vmul.f32 %v1028, %v884
    %v1077 = vmul.f32 %v1032, %v886
    %v1078 = vadd.f32 %v1074, %v1076
    %v1079 = vadd.f32 %v1075, %v1077
    %v1080 = vmul.f32 %v1036, %v912
    %v1081 = vmul.f32 %v1040, %v914
    %v1082 = vadd.f32 %v1078, %v1080
    %v1083 = vadd.f32 %v1079, %v1081
    %v1084 = vmul.f32 %v1044, %v940
    %v1085 = vmul.f32 %v1048, %v942
    %v1086 = vadd.f32 %v1082, %v1084
    %v1087 = vadd.f32 %v1083, %v1085
    %v1088 = vmul.f32 %v1052, %v968
    %v1089 = vmul.f32 %v1056, %v970
    %v1090 = vadd.f32 %v1086, %v1088
    %v1091 = vadd.f32 %v1087, %v1089
    %v1092 = vmul.f32 %v1060, %v996
    %v1093 = vmul.f32 %v1064, %v998
    %v1094 = vadd.f32 %v1090, %v1092
    %v1095 = vadd.f32 %v1091, %v1093
    %v1096 = vld [vmem:[%s8] sm:$0xff]
    %v1097 = vsel %vm268, %v289, 0
    %v1099 = vsel %vm268, %v290, 0
    %1101 = vmatpush.msra.mxu0 0.0
    %1102 = vmatpush.msra.mxu0 0.0
    %1103 = vmatpush.msra.mxu0 0.0
    %1104 = vmatpush.msra.mxu0 0.0
    %1105 = vmatpush.msra.mxu0 0.0
    %1106 = vmatpush.msra.mxu0 0.0
    %1107 = vmatpush.msra.mxu0 0.0
    %1108 = vmatpush.msra.mxu0 0.0
    %1109 = vmatpush.msra.mxu0 0.0
    %1110 = vmatpush.msra.mxu0 0.0
    %1111 = vmatpush.msra.mxu0 0.0
    %1112 = vmatpush.msra.mxu0 0.0
    %1113 = vmatpush.msra.mxu0 0.0
    %1114 = vmatpush.msra.mxu0 0.0
    %1115 = vmatpush.msra.mxu0 0.0
    %1116 = vmatpush.msra.mxu0 %v1096
    %1117 = vmatmul.f32.gmra.mxu0 %v1097
    %v1118 = vpop.f32.mrf.mxu0
    %v1119 = vadd.f32 0.0, %v1118
    %1120 = vmatmul.f32.gmra.mxu0 %v1099
    %v1121 = vpop.f32.mrf.mxu0
    %v1122 = vadd.f32 0.0, %v1121
    %1123 = vdwg.mxu0
    %v1124 = vadd.f32 %v1094, %v1119
    %v1125 = vadd.f32 %v1095, %v1122
    %vm1126 = vcmp.gt.f32.partialorder %v1124, 0.0
    %vm1127 = vcmp.gt.f32.partialorder %v1125, 0.0
    %v1128 = vmul.f32 %v1124, 1.442695
    %v1129 = vpow.pop %v1128
    %v1130 = vmul.f32 %v1125, 1.442695
    %v1131 = vpow.pop %v1130
    %v1132 = vsub.f32 %v1129, 1.0
    %v1133 = vsub.f32 %v1131, 1.0
    %v1134 = vsel %vm1126, %v1124, %v1132
    %v1135 = vsel %vm1127, %v1125, %v1133
    %v1136 = vpack.c.bf16 %v1135, %v1134
    %v1137 = vld [vmem:[#allocation5] sm:$0xff]
    %v1138 = vld [vmem:[#allocation5 + $0x8] sm:$0xff]
    %v1139 = vld [vmem:[#allocation5 + $0x10] sm:$0xff]
    %v1140 = vld [vmem:[#allocation5 + $0x18] sm:$0xff]
    %v1141 = vld [vmem:[#allocation5 + $0x20] sm:$0xff]
    %v1142 = vld [vmem:[#allocation5 + $0x28] sm:$0xff]
    %v1143 = vld [vmem:[#allocation5 + $0x30] sm:$0xff]
    %v1144 = vld [vmem:[#allocation5 + $0x38] sm:$0xff]
    %v1145 = vld [vmem:[#allocation5 + $0x40] sm:$0xff]
    %v1146 = vld [vmem:[#allocation5 + $0x48] sm:$0xff]
    %v1147 = vld [vmem:[#allocation5 + $0x50] sm:$0xff]
    %v1148 = vld [vmem:[#allocation5 + $0x58] sm:$0xff]
    %v1149 = vld [vmem:[#allocation5 + $0x60] sm:$0xff]
    %v1150 = vld [vmem:[#allocation5 + $0x68] sm:$0xff]
    %v1151 = vld [vmem:[#allocation5 + $0x70] sm:$0xff]
    %v1152 = vld [vmem:[#allocation5 + $0x78] sm:$0xff]
    %v1153 = vld [vmem:[#allocation5 + $0x80] sm:$0xff]
    %v1154 = vld [vmem:[#allocation5 + $0x88] sm:$0xff]
    %v1155 = vld [vmem:[#allocation5 + $0x90] sm:$0xff]
    %v1156 = vld [vmem:[#allocation5 + $0x98] sm:$0xff]
    %v1157 = vld [vmem:[#allocation5 + $0xa0] sm:$0xff]
    %v1158 = vld [vmem:[#allocation5 + $0xa8] sm:$0xff]
    %v1159 = vld [vmem:[#allocation5 + $0xb0] sm:$0xff]
    %v1160 = vld [vmem:[#allocation5 + $0xb8] sm:$0xff]
    %v1161 = vld [vmem:[#allocation5 + $0xc0] sm:$0xff]
    %v1162 = vld [vmem:[#allocation5 + $0xc8] sm:$0xff]
    %v1163 = vld [vmem:[#allocation5 + $0xd0] sm:$0xff]
    %v1164 = vld [vmem:[#allocation5 + $0xd8] sm:$0xff]
    %v1165 = vld [vmem:[#allocation5 + $0xe0] sm:$0xff]
    %v1166 = vld [vmem:[#allocation5 + $0xe8] sm:$0xff]
    %v1167 = vld [vmem:[#allocation5 + $0xf0] sm:$0xff]
    %v1168 = vld [vmem:[#allocation5 + $0xf8] sm:$0xff]
    %v1169 = vld [vmem:[#allocation5 + $0x100] sm:$0xff]
    %v1170 = vld [vmem:[#allocation5 + $0x108] sm:$0xff]
    %v1171 = vld [vmem:[#allocation5 + $0x110] sm:$0xff]
    %v1172 = vld [vmem:[#allocation5 + $0x118] sm:$0xff]
    %v1173 = vld [vmem:[#allocation5 + $0x120] sm:$0xff]
    %v1174 = vld [vmem:[#allocation5 + $0x128] sm:$0xff]
    %v1175 = vld [vmem:[#allocation5 + $0x130] sm:$0xff]
    %v1176 = vld [vmem:[#allocation5 + $0x138] sm:$0xff]
    %v1177 = vld [vmem:[#allocation5 + $0x140] sm:$0xff]
    %v1178 = vld [vmem:[#allocation5 + $0x148] sm:$0xff]
    %v1179 = vld [vmem:[#allocation5 + $0x150] sm:$0xff]
    %v1180 = vld [vmem:[#allocation5 + $0x158] sm:$0xff]
    %v1181 = vld [vmem:[#allocation5 + $0x160] sm:$0xff]
    %v1182 = vld [vmem:[#allocation5 + $0x168] sm:$0xff]
    %v1183 = vld [vmem:[#allocation5 + $0x170] sm:$0xff]
    %v1184 = vld [vmem:[#allocation5 + $0x178] sm:$0xff]
    %v1185 = vld [vmem:[#allocation5 + $0x180] sm:$0xff]
    %v1186 = vld [vmem:[#allocation5 + $0x188] sm:$0xff]
    %v1187 = vld [vmem:[#allocation5 + $0x190] sm:$0xff]
    %v1188 = vld [vmem:[#allocation5 + $0x198] sm:$0xff]
    %v1189 = vld [vmem:[#allocation5 + $0x1a0] sm:$0xff]
    %v1190 = vld [vmem:[#allocation5 + $0x1a8] sm:$0xff]
    %v1191 = vld [vmem:[#allocation5 + $0x1b0] sm:$0xff]
    %v1192 = vld [vmem:[#allocation5 + $0x1b8] sm:$0xff]
    %v1193 = vld [vmem:[#allocation5 + $0x1c0] sm:$0xff]
    %v1194 = vld [vmem:[#allocation5 + $0x1c8] sm:$0xff]
    %v1195 = vld [vmem:[#allocation5 + $0x1d0] sm:$0xff]
    %v1196 = vld [vmem:[#allocation5 + $0x1d8] sm:$0xff]
    %v1197 = vld [vmem:[#allocation5 + $0x1e0] sm:$0xff]
    %v1198 = vld [vmem:[#allocation5 + $0x1e8] sm:$0xff]
    %v1199 = vld [vmem:[#allocation5 + $0x1f0] sm:$0xff]
    %v1200 = vld [vmem:[#allocation5 + $0x1f8] sm:$0xff]
    %v1265 = vunpack.c.l.b16 %v1137
    %v1266 = vunpack.c.h.b16 %v1137
    %v1267 = vunpack.c.l.b16 %v1138
    %v1268 = vunpack.c.h.b16 %v1138
    %v1269 = vunpack.c.l.b16 %v1139
    %v1270 = vunpack.c.h.b16 %v1139
    %v1271 = vunpack.c.l.b16 %v1140
    %v1272 = vunpack.c.h.b16 %v1140
    %v1273 = vunpack.c.l.b16 %v1141
    %v1274 = vunpack.c.h.b16 %v1141
    %v1275 = vunpack.c.l.b16 %v1142
    %v1276 = vunpack.c.h.b16 %v1142
    %v1277 = vunpack.c.l.b16 %v1143
    %v1278 = vunpack.c.h.b16 %v1143
    %v1279 = vunpack.c.l.b16 %v1144
    %v1280 = vunpack.c.h.b16 %v1144
    %v1281 = vunpack.c.l.b16 %v1145
    %v1282 = vunpack.c.h.b16 %v1145
    %v1283 = vunpack.c.l.b16 %v1146
    %v1284 = vunpack.c.h.b16 %v1146
    %v1285 = vunpack.c.l.b16 %v1147
    %v1286 = vunpack.c.h.b16 %v1147
    %v1287 = vunpack.c.l.b16 %v1148
    %v1288 = vunpack.c.h.b16 %v1148
    %v1289 = vunpack.c.l.b16 %v1149
    %v1290 = vunpack.c.h.b16 %v1149
    %v1291 = vunpack.c.l.b16 %v1150
    %v1292 = vunpack.c.h.b16 %v1150
    %v1293 = vunpack.c.l.b16 %v1151
    %v1294 = vunpack.c.h.b16 %v1151
    %v1295 = vunpack.c.l.b16 %v1152
    %v1296 = vunpack.c.h.b16 %v1152
    %v1297 = vunpack.c.l.b16 %v1153
    %v1298 = vunpack.c.h.b16 %v1153
    %v1299 = vunpack.c.l.b16 %v1154
    %v1300 = vunpack.c.h.b16 %v1154
    %v1301 = vunpack.c.l.b16 %v1155
    %v1302 = vunpack.c.h.b16 %v1155
    %v1303 = vunpack.c.l.b16 %v1156
    %v1304 = vunpack.c.h.b16 %v1156
    %v1305 = vunpack.c.l.b16 %v1157
    %v1306 = vunpack.c.h.b16 %v1157
    %v1307 = vunpack.c.l.b16 %v1158
    %v1308 = vunpack.c.h.b16 %v1158
    %v1309 = vunpack.c.l.b16 %v1159
    %v1310 = vunpack.c.h.b16 %v1159
    %v1311 = vunpack.c.l.b16 %v1160
    %v1312 = vunpack.c.h.b16 %v1160
    %v1313 = vunpack.c.l.b16 %v1161
    %v1314 = vunpack.c.h.b16 %v1161
    %v1315 = vunpack.c.l.b16 %v1162
    %v1316 = vunpack.c.h.b16 %v1162
    %v1317 = vunpack.c.l.b16 %v1163
    %v1318 = vunpack.c.h.b16 %v1163
    %v1319 = vunpack.c.l.b16 %v1164
    %v1320 = vunpack.c.h.b16 %v1164
    %v1321 = vunpack.c.l.b16 %v1165
    %v1322 = vunpack.c.h.b16 %v1165
    %v1323 = vunpack.c.l.b16 %v1166
    %v1324 = vunpack.c.h.b16 %v1166
    %v1325 = vunpack.c.l.b16 %v1167
    %v1326 = vunpack.c.h.b16 %v1167
    %v1327 = vunpack.c.l.b16 %v1168
    %v1328 = vunpack.c.h.b16 %v1168
    %v1329 = vunpack.c.l.b16 %v1169
    %v1330 = vunpack.c.h.b16 %v1169
    %v1331 = vunpack.c.l.b16 %v1170
    %v1332 = vunpack.c.h.b16 %v1170
    %v1333 = vunpack.c.l.b16 %v1171
    %v1334 = vunpack.c.h.b16 %v1171
    %v1335 = vunpack.c.l.b16 %v1172
    %v1336 = vunpack.c.h.b16 %v1172
    %v1337 = vunpack.c.l.b16 %v1173
    %v1338 = vunpack.c.h.b16 %v1173
    %v1339 = vunpack.c.l.b16 %v1174
    %v1340 = vunpack.c.h.b16 %v1174
    %v1341 = vunpack.c.l.b16 %v1175
    %v1342 = vunpack.c.h.b16 %v1175
    %v1343 = vunpack.c.l.b16 %v1176
    %v1344 = vunpack.c.h.b16 %v1176
    %v1345 = vunpack.c.l.b16 %v1177
    %v1346 = vunpack.c.h.b16 %v1177
    %v1347 = vunpack.c.l.b16 %v1178
    %v1348 = vunpack.c.h.b16 %v1178
    %v1349 = vunpack.c.l.b16 %v1179
    %v1350 = vunpack.c.h.b16 %v1179
    %v1351 = vunpack.c.l.b16 %v1180
    %v1352 = vunpack.c.h.b16 %v1180
    %v1353 = vunpack.c.l.b16 %v1181
    %v1354 = vunpack.c.h.b16 %v1181
    %v1355 = vunpack.c.l.b16 %v1182
    %v1356 = vunpack.c.h.b16 %v1182
    %v1357 = vunpack.c.l.b16 %v1183
    %v1358 = vunpack.c.h.b16 %v1183
    %v1359 = vunpack.c.l.b16 %v1184
    %v1360 = vunpack.c.h.b16 %v1184
    %v1361 = vunpack.c.l.b16 %v1185
    %v1362 = vunpack.c.h.b16 %v1185
    %v1363 = vunpack.c.l.b16 %v1186
    %v1364 = vunpack.c.h.b16 %v1186
    %v1365 = vunpack.c.l.b16 %v1187
    %v1366 = vunpack.c.h.b16 %v1187
    %v1367 = vunpack.c.l.b16 %v1188
    %v1368 = vunpack.c.h.b16 %v1188
    %v1369 = vunpack.c.l.b16 %v1189
    %v1370 = vunpack.c.h.b16 %v1189
    %v1371 = vunpack.c.l.b16 %v1190
    %v1372 = vunpack.c.h.b16 %v1190
    %v1373 = vunpack.c.l.b16 %v1191
    %v1374 = vunpack.c.h.b16 %v1191
    %v1375 = vunpack.c.l.b16 %v1192
    %v1376 = vunpack.c.h.b16 %v1192
    %v1377 = vunpack.c.l.b16 %v1193
    %v1378 = vunpack.c.h.b16 %v1193
    %v1379 = vunpack.c.l.b16 %v1194
    %v1380 = vunpack.c.h.b16 %v1194
    %v1381 = vunpack.c.l.b16 %v1195
    %v1382 = vunpack.c.h.b16 %v1195
    %v1383 = vunpack.c.l.b16 %v1196
    %v1384 = vunpack.c.h.b16 %v1196
    %v1385 = vunpack.c.l.b16 %v1197
    %v1386 = vunpack.c.h.b16 %v1197
    %v1387 = vunpack.c.l.b16 %v1198
    %v1388 = vunpack.c.h.b16 %v1198
    %v1389 = vunpack.c.l.b16 %v1199
    %v1390 = vunpack.c.h.b16 %v1199
    %v1391 = vunpack.c.l.b16 %v1200
    %v1392 = vunpack.c.h.b16 %v1200
    %v1393 = vpack.c.b16 %v1273, %v1265
    %v1394 = vpack.c.b16 %v1274, %v1266
    %v1395 = vpack.c.b16 %v1275, %v1267
    %v1396 = vpack.c.b16 %v1276, %v1268
    %v1397 = vpack.c.b16 %v1277, %v1269
    %v1398 = vpack.c.b16 %v1278, %v1270
    %v1399 = vpack.c.b16 %v1279, %v1271
    %v1400 = vpack.c.b16 %v1280, %v1272
    %v1401 = vpack.c.b16 %v1289, %v1281
    %v1402 = vpack.c.b16 %v1290, %v1282
    %v1403 = vpack.c.b16 %v1291, %v1283
    %v1404 = vpack.c.b16 %v1292, %v1284
    %v1405 = vpack.c.b16 %v1293, %v1285
    %v1406 = vpack.c.b16 %v1294, %v1286
    %v1407 = vpack.c.b16 %v1295, %v1287
    %v1408 = vpack.c.b16 %v1296, %v1288
    %v1409 = vpack.c.b16 %v1305, %v1297
    %v1410 = vpack.c.b16 %v1306, %v1298
    %v1411 = vpack.c.b16 %v1307, %v1299
    %v1412 = vpack.c.b16 %v1308, %v1300
    %v1413 = vpack.c.b16 %v1309, %v1301
    %v1414 = vpack.c.b16 %v1310, %v1302
    %v1415 = vpack.c.b16 %v1311, %v1303
    %v1416 = vpack.c.b16 %v1312, %v1304
    %v1417 = vpack.c.b16 %v1321, %v1313
    %v1418 = vpack.c.b16 %v1322, %v1314
    %v1419 = vpack.c.b16 %v1323, %v1315
    %v1420 = vpack.c.b16 %v1324, %v1316
    %v1421 = vpack.c.b16 %v1325, %v1317
    %v1422 = vpack.c.b16 %v1326, %v1318
    %v1423 = vpack.c.b16 %v1327, %v1319
    %v1424 = vpack.c.b16 %v1328, %v1320
    %v1425 = vpack.c.b16 %v1337, %v1329
    %v1426 = vpack.c.b16 %v1338, %v1330
    %v1427 = vpack.c.b16 %v1339, %v1331
    %v1428 = vpack.c.b16 %v1340, %v1332
    %v1429 = vpack.c.b16 %v1341, %v1333
    %v1430 = vpack.c.b16 %v1342, %v1334
    %v1431 = vpack.c.b16 %v1343, %v1335
    %v1432 = vpack.c.b16 %v1344, %v1336
    %v1433 = vpack.c.b16 %v1353, %v1345
    %v1434 = vpack.c.b16 %v1354, %v1346
    %v1435 = vpack.c.b16 %v1355, %v1347
    %v1436 = vpack.c.b16 %v1356, %v1348
    %v1437 = vpack.c.b16 %v1357, %v1349
    %v1438 = vpack.c.b16 %v1358, %v1350
    %v1439 = vpack.c.b16 %v1359, %v1351
    %v1440 = vpack.c.b16 %v1360, %v1352
    %v1441 = vpack.c.b16 %v1369, %v1361
    %v1442 = vpack.c.b16 %v1370, %v1362
    %v1443 = vpack.c.b16 %v1371, %v1363
    %v1444 = vpack.c.b16 %v1372, %v1364
    %v1445 = vpack.c.b16 %v1373, %v1365
    %v1446 = vpack.c.b16 %v1374, %v1366
    %v1447 = vpack.c.b16 %v1375, %v1367
    %v1448 = vpack.c.b16 %v1376, %v1368
    %v1449 = vpack.c.b16 %v1385, %v1377
    %v1450 = vpack.c.b16 %v1386, %v1378
    %v1451 = vpack.c.b16 %v1387, %v1379
    %v1452 = vpack.c.b16 %v1388, %v1380
    %v1453 = vpack.c.b16 %v1389, %v1381
    %v1454 = vpack.c.b16 %v1390, %v1382
    %v1455 = vpack.c.b16 %v1391, %v1383
    %v1456 = vpack.c.b16 %v1392, %v1384
    %1521 = vmatpush.bf16.msra.mxu0 %v1449
    %1522 = vmatpush.bf16.msra.mxu0 %v1441
    %1523 = vmatpush.bf16.msra.mxu0 %v1433
    %1524 = vmatpush.bf16.msra.mxu0 %v1425
    %1525 = vmatpush.bf16.msra.mxu0 %v1417
    %1526 = vmatpush.bf16.msra.mxu0 %v1409
    %1527 = vmatpush.bf16.msra.mxu0 %v1401
    %1528 = vmatpush.bf16.msra.mxu0 %v1393
    %1529 = vmatmul.bf16.gmra.mxu0 %v1136
    %v1530 = vpop.f32.mrf.mxu0
    %v1531 = vadd.f32 0.0, %v1530
    %v1532 = vpop.f32.mrf.mxu0
    %v1533 = vadd.f32 0.0, %v1532
    %1534 = vdwg.mxu0
    %1535 = vmatpush.bf16.msra.mxu0 %v1450
    %1536 = vmatpush.bf16.msra.mxu0 %v1442
    %1537 = vmatpush.bf16.msra.mxu0 %v1434
    %1538 = vmatpush.bf16.msra.mxu0 %v1426
    %1539 = vmatpush.bf16.msra.mxu0 %v1418
    %1540 = vmatpush.bf16.msra.mxu0 %v1410
    %1541 = vmatpush.bf16.msra.mxu0 %v1402
    %1542 = vmatpush.bf16.msra.mxu0 %v1394
    %1543 = vmatmul.bf16.gmra.mxu0 %v1136
    %v1544 = vpop.f32.mrf.mxu0
    %v1545 = vadd.f32 0.0, %v1544
    %v1546 = vpop.f32.mrf.mxu0
    %v1547 = vadd.f32 0.0, %v1546
    %1548 = vdwg.mxu0
    %1549 = vmatpush.bf16.msra.mxu0 %v1451
    %1550 = vmatpush.bf16.msra.mxu0 %v1443
    %1551 = vmatpush.bf16.msra.mxu0 %v1435
    %1552 = vmatpush.bf16.msra.mxu0 %v1427
    %1553 = vmatpush.bf16.msra.mxu0 %v1419
    %1554 = vmatpush.bf16.msra.mxu0 %v1411
    %1555 = vmatpush.bf16.msra.mxu0 %v1403
    %1556 = vmatpush.bf16.msra.mxu0 %v1395
    %1557 = vmatmul.bf16.gmra.mxu0 %v1136
    %v1558 = vpop.f32.mrf.mxu0
    %v1559 = vadd.f32 0.0, %v1558
    %v1560 = vpop.f32.mrf.mxu0
    %v1561 = vadd.f32 0.0, %v1560
    %1562 = vdwg.mxu0
    %1563 = vmatpush.bf16.msra.mxu0 %v1452
    %1564 = vmatpush.bf16.msra.mxu0 %v1444
    %1565 = vmatpush.bf16.msra.mxu0 %v1436
    %1566 = vmatpush.bf16.msra.mxu0 %v1428
    %1567 = vmatpush.bf16.msra.mxu0 %v1420
    %1568 = vmatpush.bf16.msra.mxu0 %v1412
    %1569 = vmatpush.bf16.msra.mxu0 %v1404
    %1570 = vmatpush.bf16.msra.mxu0 %v1396
    %1571 = vmatmul.bf16.gmra.mxu0 %v1136
    %v1572 = vpop.f32.mrf.mxu0
    %v1573 = vadd.f32 0.0, %v1572
    %v1574 = vpop.f32.mrf.mxu0
    %v1575 = vadd.f32 0.0, %v1574
    %1576 = vdwg.mxu0
    %1577 = vmatpush.bf16.msra.mxu0 %v1453
    %1578 = vmatpush.bf16.msra.mxu0 %v1445
    %1579 = vmatpush.bf16.msra.mxu0 %v1437
    %1580 = vmatpush.bf16.msra.mxu0 %v1429
    %1581 = vmatpush.bf16.msra.mxu0 %v1421
    %1582 = vmatpush.bf16.msra.mxu0 %v1413
    %1583 = vmatpush.bf16.msra.mxu0 %v1405
    %1584 = vmatpush.bf16.msra.mxu0 %v1397
    %1585 = vmatmul.bf16.gmra.mxu0 %v1136
    %v1586 = vpop.f32.mrf.mxu0
    %v1587 = vadd.f32 0.0, %v1586
    %v1588 = vpop.f32.mrf.mxu0
    %v1589 = vadd.f32 0.0, %v1588
    %1590 = vdwg.mxu0
    %1591 = vmatpush.bf16.msra.mxu0 %v1454
    %1592 = vmatpush.bf16.msra.mxu0 %v1446
    %1593 = vmatpush.bf16.msra.mxu0 %v1438
    %1594 = vmatpush.bf16.msra.mxu0 %v1430
    %1595 = vmatpush.bf16.msra.mxu0 %v1422
    %1596 = vmatpush.bf16.msra.mxu0 %v1414
    %1597 = vmatpush.bf16.msra.mxu0 %v1406
    %1598 = vmatpush.bf16.msra.mxu0 %v1398
    %1599 = vmatmul.bf16.gmra.mxu0 %v1136
    %v1600 = vpop.f32.mrf.mxu0
    %v1601 = vadd.f32 0.0, %v1600
    %v1602 = vpop.f32.mrf.mxu0
    %v1603 = vadd.f32 0.0, %v1602
    %1604 = vdwg.mxu0
    %1605 = vmatpush.bf16.msra.mxu0 %v1455
    %1606 = vmatpush.bf16.msra.mxu0 %v1447
    %1607 = vmatpush.bf16.msra.mxu0 %v1439
    %1608 = vmatpush.bf16.msra.mxu0 %v1431
    %1609 = vmatpush.bf16.msra.mxu0 %v1423
    %1610 = vmatpush.bf16.msra.mxu0 %v1415
    %1611 = vmatpush.bf16.msra.mxu0 %v1407
    %1612 = vmatpush.bf16.msra.mxu0 %v1399
    %1613 = vmatmul.bf16.gmra.mxu0 %v1136
    %v1614 = vpop.f32.mrf.mxu0
    %v1615 = vadd.f32 0.0, %v1614
    %v1616 = vpop.f32.mrf.mxu0
    %v1617 = vadd.f32 0.0, %v1616
    %1618 = vdwg.mxu0
    %1619 = vmatpush.bf16.msra.mxu0 %v1456
    %1620 = vmatpush.bf16.msra.mxu0 %v1448
    %1621 = vmatpush.bf16.msra.mxu0 %v1440
    %1622 = vmatpush.bf16.msra.mxu0 %v1432
    %1623 = vmatpush.bf16.msra.mxu0 %v1424
    %1624 = vmatpush.bf16.msra.mxu0 %v1416
    %1625 = vmatpush.bf16.msra.mxu0 %v1408
    %1626 = vmatpush.bf16.msra.mxu0 %v1400
    %1627 = vmatmul.bf16.gmra.mxu0 %v1136
    %v1628 = vpop.f32.mrf.mxu0
    %v1629 = vadd.f32 0.0, %v1628
    %v1630 = vpop.f32.mrf.mxu0
    %v1631 = vadd.f32 0.0, %v1630
    %1632 = vdwg.mxu0
    %v1633 = vmul.f32 %v1003, %v1531
    %v1634 = vmul.f32 %v1008, %v1533
    %v1635 = vmul.f32 %v1012, %v1545
    %v1636 = vmul.f32 %v1016, %v1547
    %v1637 = vadd.f32 %v1633, %v1635
    %v1638 = vadd.f32 %v1634, %v1636
    %v1639 = vmul.f32 %v1020, %v1559
    %v1640 = vmul.f32 %v1024, %v1561
    %v1641 = vadd.f32 %v1637, %v1639
    %v1642 = vadd.f32 %v1638, %v1640
    %v1643 = vmul.f32 %v1028, %v1573
    %v1644 = vmul.f32 %v1032, %v1575
    %v1645 = vadd.f32 %v1641, %v1643
    %v1646 = vadd.f32 %v1642, %v1644
    %v1647 = vmul.f32 %v1036, %v1587
    %v1648 = vmul.f32 %v1040, %v1589
    %v1649 = vadd.f32 %v1645, %v1647
    %v1650 = vadd.f32 %v1646, %v1648
    %v1651 = vmul.f32 %v1044, %v1601
    %v1652 = vmul.f32 %v1048, %v1603
    %v1653 = vadd.f32 %v1649, %v1651
    %v1654 = vadd.f32 %v1650, %v1652
    %v1655 = vmul.f32 %v1052, %v1615
    %v1656 = vmul.f32 %v1056, %v1617
    %v1657 = vadd.f32 %v1653, %v1655
    %v1658 = vadd.f32 %v1654, %v1656
    %v1659 = vmul.f32 %v1060, %v1629
    %v1660 = vmul.f32 %v1064, %v1631
    %v1661 = vadd.f32 %v1657, %v1659
    %v1662 = vadd.f32 %v1658, %v1660
    %v1663 = vld [vmem:[%s10] sm:$0xff]
    %1664 = vmatpush.msra.mxu0 0.0
    %1665 = vmatpush.msra.mxu0 0.0
    %1666 = vmatpush.msra.mxu0 0.0
    %1667 = vmatpush.msra.mxu0 0.0
    %1668 = vmatpush.msra.mxu0 0.0
    %1669 = vmatpush.msra.mxu0 0.0
    %1670 = vmatpush.msra.mxu0 0.0
    %1671 = vmatpush.msra.mxu0 0.0
    %1672 = vmatpush.msra.mxu0 0.0
    %1673 = vmatpush.msra.mxu0 0.0
    %1674 = vmatpush.msra.mxu0 0.0
    %1675 = vmatpush.msra.mxu0 0.0
    %1676 = vmatpush.msra.mxu0 0.0
    %1677 = vmatpush.msra.mxu0 0.0
    %1678 = vmatpush.msra.mxu0 0.0
    %1679 = vmatpush.msra.mxu0 %v1663
    %1680 = vmatmul.f32.gmra.mxu0 %v1097
    %v1681 = vpop.f32.mrf.mxu0
    %v1682 = vadd.f32 0.0, %v1681
    %1683 = vmatmul.f32.gmra.mxu0 %v1099
    %v1684 = vpop.f32.mrf.mxu0
    %v1685 = vadd.f32 0.0, %v1684
    %1686 = vdwg.mxu0
    %v1687 = vadd.f32 %v1661, %v1682
    %v1688 = vadd.f32 %v1662, %v1685
    %vm1689 = vcmp.gt.f32.partialorder %v1687, 0.0
    %vm1690 = vcmp.gt.f32.partialorder %v1688, 0.0
    %v1691 = vmul.f32 %v1687, 1.442695
    %v1692 = vpow.pop %v1691
    %v1693 = vmul.f32 %v1688, 1.442695
    %v1694 = vpow.pop %v1693
    %v1695 = vsub.f32 %v1692, 1.0
    %v1696 = vsub.f32 %v1694, 1.0
    %v1697 = vsel %vm1689, %v1687, %v1695
    %v1698 = vsel %vm1690, %v1688, %v1696
    %v1699 = vpack.c.bf16 %v1698, %v1697
    %v1700 = vld [vmem:[#allocation7] sm:$0xff]
    %v1701 = vld [vmem:[#allocation7 + $0x8] sm:$0xff]
    %v1702 = vld [vmem:[#allocation7 + $0x10] sm:$0xff]
    %v1703 = vld [vmem:[#allocation7 + $0x18] sm:$0xff]
    %v1704 = vld [vmem:[#allocation7 + $0x20] sm:$0xff]
    %v1705 = vld [vmem:[#allocation7 + $0x28] sm:$0xff]
    %v1706 = vld [vmem:[#allocation7 + $0x30] sm:$0xff]
    %v1707 = vld [vmem:[#allocation7 + $0x38] sm:$0xff]
    %v1708 = vld [vmem:[#allocation7 + $0x40] sm:$0xff]
    %v1709 = vld [vmem:[#allocation7 + $0x48] sm:$0xff]
    %v1710 = vld [vmem:[#allocation7 + $0x50] sm:$0xff]
    %v1711 = vld [vmem:[#allocation7 + $0x58] sm:$0xff]
    %v1712 = vld [vmem:[#allocation7 + $0x60] sm:$0xff]
    %v1713 = vld [vmem:[#allocation7 + $0x68] sm:$0xff]
    %v1714 = vld [vmem:[#allocation7 + $0x70] sm:$0xff]
    %v1715 = vld [vmem:[#allocation7 + $0x78] sm:$0xff]
    %v1716 = vld [vmem:[#allocation7 + $0x80] sm:$0xff]
    %v1717 = vld [vmem:[#allocation7 + $0x88] sm:$0xff]
    %v1718 = vld [vmem:[#allocation7 + $0x90] sm:$0xff]
    %v1719 = vld [vmem:[#allocation7 + $0x98] sm:$0xff]
    %v1720 = vld [vmem:[#allocation7 + $0xa0] sm:$0xff]
    %v1721 = vld [vmem:[#allocation7 + $0xa8] sm:$0xff]
    %v1722 = vld [vmem:[#allocation7 + $0xb0] sm:$0xff]
    %v1723 = vld [vmem:[#allocation7 + $0xb8] sm:$0xff]
    %v1724 = vld [vmem:[#allocation7 + $0xc0] sm:$0xff]
    %v1725 = vld [vmem:[#allocation7 + $0xc8] sm:$0xff]
    %v1726 = vld [vmem:[#allocation7 + $0xd0] sm:$0xff]
    %v1727 = vld [vmem:[#allocation7 + $0xd8] sm:$0xff]
    %v1728 = vld [vmem:[#allocation7 + $0xe0] sm:$0xff]
    %v1729 = vld [vmem:[#allocation7 + $0xe8] sm:$0xff]
    %v1730 = vld [vmem:[#allocation7 + $0xf0] sm:$0xff]
    %v1731 = vld [vmem:[#allocation7 + $0xf8] sm:$0xff]
    %v1732 = vld [vmem:[#allocation7 + $0x100] sm:$0xff]
    %v1733 = vld [vmem:[#allocation7 + $0x108] sm:$0xff]
    %v1734 = vld [vmem:[#allocation7 + $0x110] sm:$0xff]
    %v1735 = vld [vmem:[#allocation7 + $0x118] sm:$0xff]
    %v1736 = vld [vmem:[#allocation7 + $0x120] sm:$0xff]
    %v1737 = vld [vmem:[#allocation7 + $0x128] sm:$0xff]
    %v1738 = vld [vmem:[#allocation7 + $0x130] sm:$0xff]
    %v1739 = vld [vmem:[#allocation7 + $0x138] sm:$0xff]
    %v1740 = vld [vmem:[#allocation7 + $0x140] sm:$0xff]
    %v1741 = vld [vmem:[#allocation7 + $0x148] sm:$0xff]
    %v1742 = vld [vmem:[#allocation7 + $0x150] sm:$0xff]
    %v1743 = vld [vmem:[#allocation7 + $0x158] sm:$0xff]
    %v1744 = vld [vmem:[#allocation7 + $0x160] sm:$0xff]
    %v1745 = vld [vmem:[#allocation7 + $0x168] sm:$0xff]
    %v1746 = vld [vmem:[#allocation7 + $0x170] sm:$0xff]
    %v1747 = vld [vmem:[#allocation7 + $0x178] sm:$0xff]
    %v1748 = vld [vmem:[#allocation7 + $0x180] sm:$0xff]
    %v1749 = vld [vmem:[#allocation7 + $0x188] sm:$0xff]
    %v1750 = vld [vmem:[#allocation7 + $0x190] sm:$0xff]
    %v1751 = vld [vmem:[#allocation7 + $0x198] sm:$0xff]
    %v1752 = vld [vmem:[#allocation7 + $0x1a0] sm:$0xff]
    %v1753 = vld [vmem:[#allocation7 + $0x1a8] sm:$0xff]
    %v1754 = vld [vmem:[#allocation7 + $0x1b0] sm:$0xff]
    %v1755 = vld [vmem:[#allocation7 + $0x1b8] sm:$0xff]
    %v1756 = vld [vmem:[#allocation7 + $0x1c0] sm:$0xff]
    %v1757 = vld [vmem:[#allocation7 + $0x1c8] sm:$0xff]
    %v1758 = vld [vmem:[#allocation7 + $0x1d0] sm:$0xff]
    %v1759 = vld [vmem:[#allocation7 + $0x1d8] sm:$0xff]
    %v1760 = vld [vmem:[#allocation7 + $0x1e0] sm:$0xff]
    %v1761 = vld [vmem:[#allocation7 + $0x1e8] sm:$0xff]
    %v1762 = vld [vmem:[#allocation7 + $0x1f0] sm:$0xff]
    %v1763 = vld [vmem:[#allocation7 + $0x1f8] sm:$0xff]
    %v1828 = vunpack.c.l.b16 %v1700
    %v1829 = vunpack.c.h.b16 %v1700
    %v1830 = vunpack.c.l.b16 %v1701
    %v1831 = vunpack.c.h.b16 %v1701
    %v1832 = vunpack.c.l.b16 %v1702
    %v1833 = vunpack.c.h.b16 %v1702
    %v1834 = vunpack.c.l.b16 %v1703
    %v1835 = vunpack.c.h.b16 %v1703
    %v1836 = vunpack.c.l.b16 %v1704
    %v1837 = vunpack.c.h.b16 %v1704
    %v1838 = vunpack.c.l.b16 %v1705
    %v1839 = vunpack.c.h.b16 %v1705
    %v1840 = vunpack.c.l.b16 %v1706
    %v1841 = vunpack.c.h.b16 %v1706
    %v1842 = vunpack.c.l.b16 %v1707
    %v1843 = vunpack.c.h.b16 %v1707
    %v1844 = vunpack.c.l.b16 %v1708
    %v1845 = vunpack.c.h.b16 %v1708
    %v1846 = vunpack.c.l.b16 %v1709
    %v1847 = vunpack.c.h.b16 %v1709
    %v1848 = vunpack.c.l.b16 %v1710
    %v1849 = vunpack.c.h.b16 %v1710
    %v1850 = vunpack.c.l.b16 %v1711
    %v1851 = vunpack.c.h.b16 %v1711
    %v1852 = vunpack.c.l.b16 %v1712
    %v1853 = vunpack.c.h.b16 %v1712
    %v1854 = vunpack.c.l.b16 %v1713
    %v1855 = vunpack.c.h.b16 %v1713
    %v1856 = vunpack.c.l.b16 %v1714
    %v1857 = vunpack.c.h.b16 %v1714
    %v1858 = vunpack.c.l.b16 %v1715
    %v1859 = vunpack.c.h.b16 %v1715
    %v1860 = vunpack.c.l.b16 %v1716
    %v1861 = vunpack.c.h.b16 %v1716
    %v1862 = vunpack.c.l.b16 %v1717
    %v1863 = vunpack.c.h.b16 %v1717
    %v1864 = vunpack.c.l.b16 %v1718
    %v1865 = vunpack.c.h.b16 %v1718
    %v1866 = vunpack.c.l.b16 %v1719
    %v1867 = vunpack.c.h.b16 %v1719
    %v1868 = vunpack.c.l.b16 %v1720
    %v1869 = vunpack.c.h.b16 %v1720
    %v1870 = vunpack.c.l.b16 %v1721
    %v1871 = vunpack.c.h.b16 %v1721
    %v1872 = vunpack.c.l.b16 %v1722
    %v1873 = vunpack.c.h.b16 %v1722
    %v1874 = vunpack.c.l.b16 %v1723
    %v1875 = vunpack.c.h.b16 %v1723
    %v1876 = vunpack.c.l.b16 %v1724
    %v1877 = vunpack.c.h.b16 %v1724
    %v1878 = vunpack.c.l.b16 %v1725
    %v1879 = vunpack.c.h.b16 %v1725
    %v1880 = vunpack.c.l.b16 %v1726
    %v1881 = vunpack.c.h.b16 %v1726
    %v1882 = vunpack.c.l.b16 %v1727
    %v1883 = vunpack.c.h.b16 %v1727
    %v1884 = vunpack.c.l.b16 %v1728
    %v1885 = vunpack.c.h.b16 %v1728
    %v1886 = vunpack.c.l.b16 %v1729
    %v1887 = vunpack.c.h.b16 %v1729
    %v1888 = vunpack.c.l.b16 %v1730
    %v1889 = vunpack.c.h.b16 %v1730
    %v1890 = vunpack.c.l.b16 %v1731
    %v1891 = vunpack.c.h.b16 %v1731
    %v1892 = vunpack.c.l.b16 %v1732
    %v1893 = vunpack.c.h.b16 %v1732
    %v1894 = vunpack.c.l.b16 %v1733
    %v1895 = vunpack.c.h.b16 %v1733
    %v1896 = vunpack.c.l.b16 %v1734
    %v1897 = vunpack.c.h.b16 %v1734
    %v1898 = vunpack.c.l.b16 %v1735
    %v1899 = vunpack.c.h.b16 %v1735
    %v1900 = vunpack.c.l.b16 %v1736
    %v1901 = vunpack.c.h.b16 %v1736
    %v1902 = vunpack.c.l.b16 %v1737
    %v1903 = vunpack.c.h.b16 %v1737
    %v1904 = vunpack.c.l.b16 %v1738
    %v1905 = vunpack.c.h.b16 %v1738
    %v1906 = vunpack.c.l.b16 %v1739
    %v1907 = vunpack.c.h.b16 %v1739
    %v1908 = vunpack.c.l.b16 %v1740
    %v1909 = vunpack.c.h.b16 %v1740
    %v1910 = vunpack.c.l.b16 %v1741
    %v1911 = vunpack.c.h.b16 %v1741
    %v1912 = vunpack.c.l.b16 %v1742
    %v1913 = vunpack.c.h.b16 %v1742
    %v1914 = vunpack.c.l.b16 %v1743
    %v1915 = vunpack.c.h.b16 %v1743
    %v1916 = vunpack.c.l.b16 %v1744
    %v1917 = vunpack.c.h.b16 %v1744
    %v1918 = vunpack.c.l.b16 %v1745
    %v1919 = vunpack.c.h.b16 %v1745
    %v1920 = vunpack.c.l.b16 %v1746
    %v1921 = vunpack.c.h.b16 %v1746
    %v1922 = vunpack.c.l.b16 %v1747
    %v1923 = vunpack.c.h.b16 %v1747
    %v1924 = vunpack.c.l.b16 %v1748
    %v1925 = vunpack.c.h.b16 %v1748
    %v1926 = vunpack.c.l.b16 %v1749
    %v1927 = vunpack.c.h.b16 %v1749
    %v1928 = vunpack.c.l.b16 %v1750
    %v1929 = vunpack.c.h.b16 %v1750
    %v1930 = vunpack.c.l.b16 %v1751
    %v1931 = vunpack.c.h.b16 %v1751
    %v1932 = vunpack.c.l.b16 %v1752
    %v1933 = vunpack.c.h.b16 %v1752
    %v1934 = vunpack.c.l.b16 %v1753
    %v1935 = vunpack.c.h.b16 %v1753
    %v1936 = vunpack.c.l.b16 %v1754
    %v1937 = vunpack.c.h.b16 %v1754
    %v1938 = vunpack.c.l.b16 %v1755
    %v1939 = vunpack.c.h.b16 %v1755
    %v1940 = vunpack.c.l.b16 %v1756
    %v1941 = vunpack.c.h.b16 %v1756
    %v1942 = vunpack.c.l.b16 %v1757
    %v1943 = vunpack.c.h.b16 %v1757
    %v1944 = vunpack.c.l.b16 %v1758
    %v1945 = vunpack.c.h.b16 %v1758
    %v1946 = vunpack.c.l.b16 %v1759
    %v1947 = vunpack.c.h.b16 %v1759
    %v1948 = vunpack.c.l.b16 %v1760
    %v1949 = vunpack.c.h.b16 %v1760
    %v1950 = vunpack.c.l.b16 %v1761
    %v1951 = vunpack.c.h.b16 %v1761
    %v1952 = vunpack.c.l.b16 %v1762
    %v1953 = vunpack.c.h.b16 %v1762
    %v1954 = vunpack.c.l.b16 %v1763
    %v1955 = vunpack.c.h.b16 %v1763
    %v1956 = vpack.c.b16 %v1836, %v1828
    %v1957 = vpack.c.b16 %v1837, %v1829
    %v1958 = vpack.c.b16 %v1838, %v1830
    %v1959 = vpack.c.b16 %v1839, %v1831
    %v1960 = vpack.c.b16 %v1840, %v1832
    %v1961 = vpack.c.b16 %v1841, %v1833
    %v1962 = vpack.c.b16 %v1842, %v1834
    %v1963 = vpack.c.b16 %v1843, %v1835
    %v1964 = vpack.c.b16 %v1852, %v1844
    %v1965 = vpack.c.b16 %v1853, %v1845
    %v1966 = vpack.c.b16 %v1854, %v1846
    %v1967 = vpack.c.b16 %v1855, %v1847
    %v1968 = vpack.c.b16 %v1856, %v1848
    %v1969 = vpack.c.b16 %v1857, %v1849
    %v1970 = vpack.c.b16 %v1858, %v1850
    %v1971 = vpack.c.b16 %v1859, %v1851
    %v1972 = vpack.c.b16 %v1868, %v1860
    %v1973 = vpack.c.b16 %v1869, %v1861
    %v1974 = vpack.c.b16 %v1870, %v1862
    %v1975 = vpack.c.b16 %v1871, %v1863
    %v1976 = vpack.c.b16 %v1872, %v1864
    %v1977 = vpack.c.b16 %v1873, %v1865
    %v1978 = vpack.c.b16 %v1874, %v1866
    %v1979 = vpack.c.b16 %v1875, %v1867
    %v1980 = vpack.c.b16 %v1884, %v1876
    %v1981 = vpack.c.b16 %v1885, %v1877
    %v1982 = vpack.c.b16 %v1886, %v1878
    %v1983 = vpack.c.b16 %v1887, %v1879
    %v1984 = vpack.c.b16 %v1888, %v1880
    %v1985 = vpack.c.b16 %v1889, %v1881
    %v1986 = vpack.c.b16 %v1890, %v1882
    %v1987 = vpack.c.b16 %v1891, %v1883
    %v1988 = vpack.c.b16 %v1900, %v1892
    %v1989 = vpack.c.b16 %v1901, %v1893
    %v1990 = vpack.c.b16 %v1902, %v1894
    %v1991 = vpack.c.b16 %v1903, %v1895
    %v1992 = vpack.c.b16 %v1904, %v1896
    %v1993 = vpack.c.b16 %v1905, %v1897
    %v1994 = vpack.c.b16 %v1906, %v1898
    %v1995 = vpack.c.b16 %v1907, %v1899
    %v1996 = vpack.c.b16 %v1916, %v1908
    %v1997 = vpack.c.b16 %v1917, %v1909
    %v1998 = vpack.c.b16 %v1918, %v1910
    %v1999 = vpack.c.b16 %v1919, %v1911
    %v2000 = vpack.c.b16 %v1920, %v1912
    %v2001 = vpack.c.b16 %v1921, %v1913
    %v2002 = vpack.c.b16 %v1922, %v1914
    %v2003 = vpack.c.b16 %v1923, %v1915
    %v2004 = vpack.c.b16 %v1932, %v1924
    %v2005 = vpack.c.b16 %v1933, %v1925
    %v2006 = vpack.c.b16 %v1934, %v1926
    %v2007 = vpack.c.b16 %v1935, %v1927
    %v2008 = vpack.c.b16 %v1936, %v1928
    %v2009 = vpack.c.b16 %v1937, %v1929
    %v2010 = vpack.c.b16 %v1938, %v1930
    %v2011 = vpack.c.b16 %v1939, %v1931
    %v2012 = vpack.c.b16 %v1948, %v1940
    %v2013 = vpack.c.b16 %v1949, %v1941
    %v2014 = vpack.c.b16 %v1950, %v1942
    %v2015 = vpack.c.b16 %v1951, %v1943
    %v2016 = vpack.c.b16 %v1952, %v1944
    %v2017 = vpack.c.b16 %v1953, %v1945
    %v2018 = vpack.c.b16 %v1954, %v1946
    %v2019 = vpack.c.b16 %v1955, %v1947
    %2084 = vmatpush.bf16.msra.mxu0 %v2012
    %2085 = vmatpush.bf16.msra.mxu0 %v2004
    %2086 = vmatpush.bf16.msra.mxu0 %v1996
    %2087 = vmatpush.bf16.msra.mxu0 %v1988
    %2088 = vmatpush.bf16.msra.mxu0 %v1980
    %2089 = vmatpush.bf16.msra.mxu0 %v1972
    %2090 = vmatpush.bf16.msra.mxu0 %v1964
    %2091 = vmatpush.bf16.msra.mxu0 %v1956
    %2092 = vmatmul.bf16.gmra.mxu0 %v1699
    %v2093 = vpop.f32.mrf.mxu0
    %v2094 = vadd.f32 0.0, %v2093
    %v2095 = vpop.f32.mrf.mxu0
    %v2096 = vadd.f32 0.0, %v2095
    %2097 = vdwg.mxu0
    %2098 = vmatpush.bf16.msra.mxu0 %v2013
    %2099 = vmatpush.bf16.msra.mxu0 %v2005
    %2100 = vmatpush.bf16.msra.mxu0 %v1997
    %2101 = vmatpush.bf16.msra.mxu0 %v1989
    %2102 = vmatpush.bf16.msra.mxu0 %v1981
    %2103 = vmatpush.bf16.msra.mxu0 %v1973
    %2104 = vmatpush.bf16.msra.mxu0 %v1965
    %2105 = vmatpush.bf16.msra.mxu0 %v1957
    %2106 = vmatmul.bf16.gmra.mxu0 %v1699
    %v2107 = vpop.f32.mrf.mxu0
    %v2108 = vadd.f32 0.0, %v2107
    %v2109 = vpop.f32.mrf.mxu0
    %v2110 = vadd.f32 0.0, %v2109
    %2111 = vdwg.mxu0
    %2112 = vmatpush.bf16.msra.mxu0 %v2014
    %2113 = vmatpush.bf16.msra.mxu0 %v2006
    %2114 = vmatpush.bf16.msra.mxu0 %v1998
    %2115 = vmatpush.bf16.msra.mxu0 %v1990
    %2116 = vmatpush.bf16.msra.mxu0 %v1982
    %2117 = vmatpush.bf16.msra.mxu0 %v1974
    %2118 = vmatpush.bf16.msra.mxu0 %v1966
    %2119 = vmatpush.bf16.msra.mxu0 %v1958
    %2120 = vmatmul.bf16.gmra.mxu0 %v1699
    %v2121 = vpop.f32.mrf.mxu0
    %v2122 = vadd.f32 0.0, %v2121
    %v2123 = vpop.f32.mrf.mxu0
    %v2124 = vadd.f32 0.0, %v2123
    %2125 = vdwg.mxu0
    %2126 = vmatpush.bf16.msra.mxu0 %v2015
    %2127 = vmatpush.bf16.msra.mxu0 %v2007
    %2128 = vmatpush.bf16.msra.mxu0 %v1999
    %2129 = vmatpush.bf16.msra.mxu0 %v1991
    %2130 = vmatpush.bf16.msra.mxu0 %v1983
    %2131 = vmatpush.bf16.msra.mxu0 %v1975
    %2132 = vmatpush.bf16.msra.mxu0 %v1967
    %2133 = vmatpush.bf16.msra.mxu0 %v1959
    %2134 = vmatmul.bf16.gmra.mxu0 %v1699
    %v2135 = vpop.f32.mrf.mxu0
    %v2136 = vadd.f32 0.0, %v2135
    %v2137 = vpop.f32.mrf.mxu0
    %v2138 = vadd.f32 0.0, %v2137
    %2139 = vdwg.mxu0
    %2140 = vmatpush.bf16.msra.mxu0 %v2016
    %2141 = vmatpush.bf16.msra.mxu0 %v2008
    %2142 = vmatpush.bf16.msra.mxu0 %v2000
    %2143 = vmatpush.bf16.msra.mxu0 %v1992
    %2144 = vmatpush.bf16.msra.mxu0 %v1984
    %2145 = vmatpush.bf16.msra.mxu0 %v1976
    %2146 = vmatpush.bf16.msra.mxu0 %v1968
    %2147 = vmatpush.bf16.msra.mxu0 %v1960
    %2148 = vmatmul.bf16.gmra.mxu0 %v1699
    %v2149 = vpop.f32.mrf.mxu0
    %v2150 = vadd.f32 0.0, %v2149
    %v2151 = vpop.f32.mrf.mxu0
    %v2152 = vadd.f32 0.0, %v2151
    %2153 = vdwg.mxu0
    %2154 = vmatpush.bf16.msra.mxu0 %v2017
    %2155 = vmatpush.bf16.msra.mxu0 %v2009
    %2156 = vmatpush.bf16.msra.mxu0 %v2001
    %2157 = vmatpush.bf16.msra.mxu0 %v1993
    %2158 = vmatpush.bf16.msra.mxu0 %v1985
    %2159 = vmatpush.bf16.msra.mxu0 %v1977
    %2160 = vmatpush.bf16.msra.mxu0 %v1969
    %2161 = vmatpush.bf16.msra.mxu0 %v1961
    %2162 = vmatmul.bf16.gmra.mxu0 %v1699
    %v2163 = vpop.f32.mrf.mxu0
    %v2164 = vadd.f32 0.0, %v2163
    %v2165 = vpop.f32.mrf.mxu0
    %v2166 = vadd.f32 0.0, %v2165
    %2167 = vdwg.mxu0
    %2168 = vmatpush.bf16.msra.mxu0 %v2018
    %2169 = vmatpush.bf16.msra.mxu0 %v2010
    %2170 = vmatpush.bf16.msra.mxu0 %v2002
    %2171 = vmatpush.bf16.msra.mxu0 %v1994
    %2172 = vmatpush.bf16.msra.mxu0 %v1986
    %2173 = vmatpush.bf16.msra.mxu0 %v1978
    %2174 = vmatpush.bf16.msra.mxu0 %v1970
    %2175 = vmatpush.bf16.msra.mxu0 %v1962
    %2176 = vmatmul.bf16.gmra.mxu0 %v1699
    %v2177 = vpop.f32.mrf.mxu0
    %v2178 = vadd.f32 0.0, %v2177
    %v2179 = vpop.f32.mrf.mxu0
    %v2180 = vadd.f32 0.0, %v2179
    %2181 = vdwg.mxu0
    %2182 = vmatpush.bf16.msra.mxu0 %v2019
    %2183 = vmatpush.bf16.msra.mxu0 %v2011
    %2184 = vmatpush.bf16.msra.mxu0 %v2003
    %2185 = vmatpush.bf16.msra.mxu0 %v1995
    %2186 = vmatpush.bf16.msra.mxu0 %v1987
    %2187 = vmatpush.bf16.msra.mxu0 %v1979
    %2188 = vmatpush.bf16.msra.mxu0 %v1971
    %2189 = vmatpush.bf16.msra.mxu0 %v1963
    %2190 = vmatmul.bf16.gmra.mxu0 %v1699
    %v2191 = vpop.f32.mrf.mxu0
    %v2192 = vadd.f32 0.0, %v2191
    %v2193 = vpop.f32.mrf.mxu0
    %v2194 = vadd.f32 0.0, %v2193
    %2195 = vdwg.mxu0
    %v2196 = vmul.f32 %v1003, %v2094
    %v2197 = vmul.f32 %v1008, %v2096
    %v2198 = vmul.f32 %v1012, %v2108
    %v2199 = vmul.f32 %v1016, %v2110
    %v2200 = vadd.f32 %v2196, %v2198
    %v2201 = vadd.f32 %v2197, %v2199
    %v2202 = vmul.f32 %v1020, %v2122
    %v2203 = vmul.f32 %v1024, %v2124
    %v2204 = vadd.f32 %v2200, %v2202
    %v2205 = vadd.f32 %v2201, %v2203
    %v2206 = vmul.f32 %v1028, %v2136
    %v2207 = vmul.f32 %v1032, %v2138
    %v2208 = vadd.f32 %v2204, %v2206
    %v2209 = vadd.f32 %v2205, %v2207
    %v2210 = vmul.f32 %v1036, %v2150
    %v2211 = vmul.f32 %v1040, %v2152
    %v2212 = vadd.f32 %v2208, %v2210
    %v2213 = vadd.f32 %v2209, %v2211
    %v2214 = vmul.f32 %v1044, %v2164
    %v2215 = vmul.f32 %v1048, %v2166
    %v2216 = vadd.f32 %v2212, %v2214
    %v2217 = vadd.f32 %v2213, %v2215
    %v2218 = vmul.f32 %v1052, %v2178
    %v2219 = vmul.f32 %v1056, %v2180
    %v2220 = vadd.f32 %v2216, %v2218
    %v2221 = vadd.f32 %v2217, %v2219
    %v2222 = vmul.f32 %v1060, %v2192
    %v2223 = vmul.f32 %v1064, %v2194
    %v2224 = vadd.f32 %v2220, %v2222
    %v2225 = vadd.f32 %v2221, %v2223
    %v2226 = vld [vmem:[%s12] sm:$0xff]
    %2227 = vmatpush.msra.mxu0 0.0
    %2228 = vmatpush.msra.mxu0 0.0
    %2229 = vmatpush.msra.mxu0 0.0
    %2230 = vmatpush.msra.mxu0 0.0
    %2231 = vmatpush.msra.mxu0 0.0
    %2232 = vmatpush.msra.mxu0 0.0
    %2233 = vmatpush.msra.mxu0 0.0
    %2234 = vmatpush.msra.mxu0 0.0
    %2235 = vmatpush.msra.mxu0 0.0
    %2236 = vmatpush.msra.mxu0 0.0
    %2237 = vmatpush.msra.mxu0 0.0
    %2238 = vmatpush.msra.mxu0 0.0
    %2239 = vmatpush.msra.mxu0 0.0
    %2240 = vmatpush.msra.mxu0 0.0
    %2241 = vmatpush.msra.mxu0 0.0
    %2242 = vmatpush.msra.mxu0 %v2226
    %2243 = vmatmul.f32.gmra.mxu0 %v1097
    %v2244 = vpop.f32.mrf.mxu0
    %v2245 = vadd.f32 0.0, %v2244
    %2246 = vmatmul.f32.gmra.mxu0 %v1099
    %v2247 = vpop.f32.mrf.mxu0
    %v2248 = vadd.f32 0.0, %v2247
    %2249 = vdwg.mxu0
    %v2250 = vadd.f32 %v2224, %v2245
    %v2251 = vadd.f32 %v2225, %v2248
    %2252 = vst [vmem:[#allocation8] sm:$0xff] %v2250
    %2253 = vst [vmem:[#allocation8 + $0x8] sm:$0xff] %v2251
    // Predicated region
    $region66: #{tpu_custom_call.1} parent=1 // pred_check
      _
    $region67: #{tpu_custom_call.1} parent=1 // pred_check_branch
      %2255 = sbr.rel (0) target = $region69
    $region68: #{tpu_custom_call.1} parent=1 // pred_region
      %2257 = vsyncadd [#allocation4], 0
      %s2258 = sshll.u32 [#allocation8], 4
      %s2259 = int_to_ptr.vmem [resolvable:$true] %s2258
      %s2260 = sshll.u32 %s13, 4
      %s2261 = int_to_ptr.hbm [resolvable:$true] %s2260
      %2266 = dma.vmem_to_hbm [thread:$0]  %s2259, 256, %s2261, [#allocation4], 128, 128, 8
    $region69: #{tpu_custom_call.1} parent=1 // pred_fallthru
      _
    // Predicated region
    $region70: #{tpu_custom_call.1} parent=1 // pred_check
      _
    $region71: #{tpu_custom_call.1} parent=1 // pred_check_branch
      %2268 = sbr.rel (0) target = $region73
    $region72: #{tpu_custom_call.1} parent=1 // pred_region
      %2270 = dma.done [#allocation4], 256
    $region73: #{tpu_custom_call.1} parent=1 // pred_fallthru
      _
    %2271 = vsyncpa [#allocation3], 1
    %2272 = vsyncpa [#allocation6], 1
    %2273 = vsyncpa [#allocation4], 1

</llo_original>
